<compile_context>
chip_gen: v6e
topology: v6e:2x2x1
jax: 0.10.0
libtpu: 0.0.40
codegen_flags: <defaults>
</compile_context>

<pallas_src>
import math

import jax
import jax.numpy as jnp
import numpy as np
from jax.experimental import pallas as pl
from jax.experimental.pallas import tpu as pltpu


# ---------------------------------------------------------------------------
# Fused kernel: all LSTM layers + final FC in one pallas_call (grid = ()).
# ---------------------------------------------------------------------------
def _make_fused_lstm_kernel(num_layers, seq_len, batch, hidden_size):
    T, B, H = seq_len, batch, hidden_size

    def kernel(*refs):
        # refs: x_ref, (w_ih, w_hh, bias) * L, w_fc, b_fc, out_ref, gproj_scr, ys_scr
        x_ref = refs[0]
        layer_refs = refs[1:1 + 3 * num_layers]
        w_fc_ref = refs[1 + 3 * num_layers]
        b_fc_ref = refs[2 + 3 * num_layers]
        out_ref = refs[3 + 3 * num_layers]
        gproj_ref = refs[4 + 3 * num_layers]      # VMEM scratch (T*B, 4H): hoisted x-projection
        ys_ref = refs[5 + 3 * num_layers]         # VMEM scratch (T*B, H): inter-layer activations

        seq = x_ref[...]                          # (T*B, I0) layer-0 input slab
        h = None
        for layer in range(num_layers):
            # Hoisted per-layer loads (outside the unrolled time loop).
            w_ih = layer_refs[3 * layer][...]     # (I_l, 4H)   g-cols pre-scaled x2
            w_hh = layer_refs[3 * layer + 1][...] # (H,   4H)   g-cols pre-scaled x2
            bias = layer_refs[3 * layer + 2][...] # (1,   4H)   g-cols pre-scaled x2

            # Hoisted input projection: ONE (T*B, I_l)@(I_l, 4H) matmul, bias folded in,
            # parked in VMEM so the serial loop only issues small per-step loads.
            gproj_ref[...] = (jnp.dot(seq, w_ih, preferred_element_type=jnp.float32)
                              + bias)

            h = jnp.zeros((B, H), jnp.float32)
            c = jnp.zeros((B, H), jnp.float32)
            for t in range(T):
                # Per-step work on the critical path: one (B,H)@(H,4H) matmul + one sigmoid.
                gates = (gproj_ref[t * B:(t + 1) * B, :]
                         + jnp.dot(h, w_hh, preferred_element_type=jnp.float32))  # (B, 4H)
                sig = jax.nn.sigmoid(gates)            # single full-tile EUP pass
                i_g = sig[:, 0 * H:1 * H]
                f_g = sig[:, 1 * H:2 * H]
                g_g = 2.0 * sig[:, 2 * H:3 * H] - 1.0  # tanh via sigmoid (g cols pre-scaled 2x)
                o_g = sig[:, 3 * H:4 * H]
                c = f_g * c + i_g * g_g
                h = o_g * jnp.tanh(c)
                if layer < num_layers - 1:             # last layer: only h_T needed
                    ys_ref[t * B:(t + 1) * B, :] = h
            if layer < num_layers - 1:
                seq = ys_ref[...]                      # (T*B, H) slab feeds next layer's projection
            # TODO(synk): inter-layer dropout (p=0.2) skipped — eval-mode semantics.

        # Final Linear on the last timestep's hidden state of the last layer.
        out_ref[...] = (jnp.dot(h, w_fc_ref[...], preferred_element_type=jnp.float32)
                        + b_fc_ref[...]).astype(out_ref.dtype)

    return kernel


def lstm_model_forward(params, x_bti):
    """x_bti: (B, T, input_size) float32 -> (B, output_size). Eval-mode forward."""
    B, T, I = x_bti.shape
    H = params["lstm"][0]["whh_t"].shape[0]
    O = params["fc"]["w_t"].shape[1]
    num_layers = len(params["lstm"])

    # Time-major, flattened (T*B, I) slab so each layer's input projection is ONE matmul.
    x_flat = jnp.transpose(x_bti, (1, 0, 2)).astype(jnp.float32).reshape(T * B, I)

    # Pre-scale the g-gate (cell-candidate) columns by 2 so the kernel needs only one
    # sigmoid pass per step:  tanh(x) = 2*sigmoid(2x) - 1.
    g_scale = jnp.ones((4 * H,), jnp.float32).at[2 * H:3 * H].set(2.0)

    def scale_g(w):                                    # w: (*, 4H)
        return (w * g_scale).astype(jnp.float32)

    kernel = _make_fused_lstm_kernel(num_layers, T, B, H)

    in_specs = [pl.BlockSpec((T * B, I), lambda: (0, 0))]
    inputs = [x_flat]
    for lp in params["lstm"]:
        in_sz = lp["wih_t"].shape[0]
        in_specs += [
            pl.BlockSpec((in_sz, 4 * H), lambda: (0, 0)),    # W_ih^T (g cols x2)
            pl.BlockSpec((H, 4 * H), lambda: (0, 0)),        # W_hh^T (g cols x2)
            pl.BlockSpec((1, 4 * H), lambda: (0, 0)),        # bias_ih + bias_hh (g cols x2)
        ]
        inputs += [scale_g(lp["wih_t"]), scale_g(lp["whh_t"]), scale_g(lp["bias"])]
    in_specs += [
        pl.BlockSpec((H, O), lambda: (0, 0)),                # W_fc^T
        pl.BlockSpec((1, O), lambda: (0, 0)),                # b_fc
    ]
    inputs += [params["fc"]["w_t"], params["fc"]["bias"]]

    return pl.pallas_call(
        kernel,
        out_shape=jax.ShapeDtypeStruct((B, O), jnp.float32),
        in_specs=in_specs,
        out_specs=pl.BlockSpec((B, O), lambda: (0, 0)),
        scratch_shapes=[
            pltpu.VMEM((T * B, 4 * H), jnp.float32),         # hoisted input projection
            pltpu.VMEM((T * B, H), jnp.float32),             # inter-layer activations
        ],
    )(*inputs)


# ---------------------------------------------------------------------------
# Parameter construction (deterministic, matches nn.LSTM / nn.Linear shapes).
# ---------------------------------------------------------------------------
def init_params(key, input_size, hidden_size, num_layers, output_size):
    params = {"lstm": []}
    bound = 1.0 / math.sqrt(hidden_size)
    for layer in range(num_layers):
        in_sz = input_size if layer == 0 else hidden_size
        key, k1, k2, k3, k4 = jax.random.split(key, 5)
        w_ih = jax.random.uniform(k1, (4 * hidden_size, in_sz),
                                  jnp.float32, -bound, bound)
        w_hh = jax.random.uniform(k2, (4 * hidden_size, hidden_size),
                                  jnp.float32, -bound, bound)
        b_ih = jax.random.uniform(k3, (4 * hidden_size,), jnp.float32, -bound, bound)
        b_hh = jax.random.uniform(k4, (4 * hidden_size,), jnp.float32, -bound, bound)
        params["lstm"].append({
            "wih_t": w_ih.T,                               # (I, 4H)
            "whh_t": w_hh.T,                               # (H, 4H)
            "bias": (b_ih + b_hh).reshape(1, -1),          # (1, 4H)
        })
    key, k5, k6 = jax.random.split(key, 3)
    fc_bound = 1.0 / math.sqrt(hidden_size)
    w_fc = jax.random.uniform(k5, (output_size, hidden_size),
                              jnp.float32, -fc_bound, fc_bound)
    b_fc = jax.random.uniform(k6, (output_size,), jnp.float32, -fc_bound, fc_bound)
    params["fc"] = {"w_t": w_fc.T, "bias": b_fc.reshape(1, -1)}
    return params


# ---------------------------------------------------------------------------
# Pure numpy (float64) reference (standard LSTM math on UNscaled params).
# ---------------------------------------------------------------------------
def _reference_forward(params, x_bti):
    x = np.asarray(x_bti, np.float64)
    B, T, _ = x.shape
    seq = x
    for lp in params["lstm"]:
        wih = np.asarray(lp["wih_t"], np.float64)
        whh = np.asarray(lp["whh_t"], np.float64)
        b = np.asarray(lp["bias"], np.float64)
        H = whh.shape[0]
        h = np.zeros((B, H)); c = np.zeros((B, H))
        outs = []
        for t in range(T):
            g = seq[:, t, :] @ wih + h @ whh + b
            i = 1.0 / (1.0 + np.exp(-g[:, 0 * H:1 * H]))
            f = 1.0 / (1.0 + np.exp(-g[:, 1 * H:2 * H]))
            gg = np.tanh(g[:, 2 * H:3 * H])
            o = 1.0 / (1.0 + np.exp(-g[:, 3 * H:4 * H]))
            c = f * c + i * gg
            h = o * np.tanh(c)
            outs.append(h)
        seq = np.stack(outs, axis=1)
    wfc = np.asarray(params["fc"]["w_t"], np.float64)
    bfc = np.asarray(params["fc"]["bias"], np.float64)
    return seq[:, -1, :] @ wfc + bfc


if __name__ == "__main__":
    INPUT_SIZE = 8
    HIDDEN_SIZE = 32
    NUM_LAYERS = 2
    OUTPUT_SIZE = 4
    BATCH = 2
    SEQ = 8

    key = jax.random.PRNGKey(0)
    key, xk = jax.random.split(key)
    x = jax.random.normal(xk, (BATCH, SEQ, INPUT_SIZE), dtype=jnp.float32)

    params = init_params(key, INPUT_SIZE, HIDDEN_SIZE, NUM_LAYERS, OUTPUT_SIZE)

    fwd = jax.jit(lstm_model_forward)
    out = jax.block_until_ready(fwd(params, x))
    assert out.shape == (BATCH, OUTPUT_SIZE)

    ref = _reference_forward(params, x)
    assert np.allclose(np.asarray(out), ref, atol=2e-3, rtol=2e-3), \
        "Pallas fused LSTM output mismatch vs reference"

    print("KERNEL_OK")
</pallas_src>

<mosaic_0001>
module attributes {stable_mosaic.version = 11 : i64} {
  func.func @kernel(%arg0: memref<16x8xf32, #tpu.memory_space<vmem>>, %arg1: memref<8x128xf32, #tpu.memory_space<vmem>>, %arg2: memref<32x128xf32, #tpu.memory_space<vmem>>, %arg3: memref<1x128xf32, #tpu.memory_space<vmem>>, %arg4: memref<32x128xf32, #tpu.memory_space<vmem>>, %arg5: memref<32x128xf32, #tpu.memory_space<vmem>>, %arg6: memref<1x128xf32, #tpu.memory_space<vmem>>, %arg7: memref<32x4xf32, #tpu.memory_space<vmem>>, %arg8: memref<1x4xf32, #tpu.memory_space<vmem>>, %arg9: memref<2x4xf32, #tpu.memory_space<vmem>>, %arg10: memref<16x128xf32, #tpu.memory_space<vmem>>, %arg11: memref<16x32xf32, #tpu.memory_space<vmem>>) attributes {dimension_semantics = [], scalar_prefetch = 0 : i64, scratch_operands = 2 : i64, tpu.core_type = #tpu.core_type<tc>} {
    %c0 = arith.constant 0 : index
    %c0_0 = arith.constant 0 : index
    %0 = vector.load %arg0[%c0, %c0_0] : memref<16x8xf32, #tpu.memory_space<vmem>>, vector<16x8xf32>
    %c0_1 = arith.constant 0 : index
    %c0_2 = arith.constant 0 : index
    %1 = vector.load %arg1[%c0_1, %c0_2] : memref<8x128xf32, #tpu.memory_space<vmem>>, vector<8x128xf32>
    %c0_3 = arith.constant 0 : index
    %c0_4 = arith.constant 0 : index
    %2 = vector.load %arg2[%c0_3, %c0_4] : memref<32x128xf32, #tpu.memory_space<vmem>>, vector<32x128xf32>
    %c0_5 = arith.constant 0 : index
    %c0_6 = arith.constant 0 : index
    %3 = vector.load %arg3[%c0_5, %c0_6] : memref<1x128xf32, #tpu.memory_space<vmem>>, vector<1x128xf32>
    %cst = arith.constant dense<0.000000e+00> : vector<16x128xf32>
    %4 = tpu.matmul %0, %1, %cst {dimension_numbers = #tpu.dot_dimension_numbers<[1], [0], [0], [1], [0, 0, 1, 1], [], []>} : vector<16x8xf32>, vector<8x128xf32>, vector<16x128xf32> -> vector<16x128xf32>
    %5 = vector.broadcast %3 : vector<1x128xf32> to vector<16x128xf32>
    %6 = arith.addf %4, %5 : vector<16x128xf32>
    %c0_7 = arith.constant 0 : index
    %c0_8 = arith.constant 0 : index
    %7 = vector.load %arg10[%c0_7, %c0_8] : memref<16x128xf32, #tpu.memory_space<vmem>>, vector<16x128xf32>
    tpu.vector_store %arg10[%c0_7, %c0_8], %6 {strides = array<i32>} : memref<16x128xf32, #tpu.memory_space<vmem>>, vector<16x128xf32>,
    %cst_9 = arith.constant 0.000000e+00 : f32
    %8 = vector.broadcast %cst_9 : f32 to vector<2x32xf32>
    %cst_10 = arith.constant 0.000000e+00 : f32
    %9 = vector.broadcast %cst_10 : f32 to vector<2x32xf32>
    %c0_11 = arith.constant 0 : index
    %c0_12 = arith.constant 0 : index
    %10 = vector.load %arg10[%c0_11, %c0_12] : memref<16x128xf32, #tpu.memory_space<vmem>>, vector<2x128xf32>
    %cst_13 = arith.constant dense<0.000000e+00> : vector<2x128xf32>
    %11 = tpu.matmul %8, %2, %cst_13 {dimension_numbers = #tpu.dot_dimension_numbers<[1], [0], [0], [1], [0, 0, 1, 1], [], []>} : vector<2x32xf32>, vector<32x128xf32>, vector<2x128xf32> -> vector<2x128xf32>
    %12 = arith.addf %10, %11 : vector<2x128xf32>
    %13 = arith.negf %12 : vector<2x128xf32>
    %14 = math.exp %13 : vector<2x128xf32>
    %cst_14 = arith.constant 1.000000e+00 : f32
    %15 = vector.broadcast %cst_14 : f32 to vector<2x128xf32>
    %16 = arith.addf %15, %14 : vector<2x128xf32>
    %17 = arith.divf %15, %16 : vector<2x128xf32>
    %18 = vector.extract_strided_slice %17 {offsets = [0, 0], sizes = [2, 32], strides = [1, 1]} : vector<2x128xf32> to vector<2x32xf32>
    %19 = vector.extract_strided_slice %17 {offsets = [0, 32], sizes = [2, 32], strides = [1, 1]} : vector<2x128xf32> to vector<2x32xf32>
    %20 = vector.extract_strided_slice %17 {offsets = [0, 64], sizes = [2, 32], strides = [1, 1]} : vector<2x128xf32> to vector<2x32xf32>
    %cst_15 = arith.constant 2.000000e+00 : f32
    %21 = vector.broadcast %cst_15 : f32 to vector<2x32xf32>
    %22 = arith.mulf %21, %20 : vector<2x32xf32>
    %cst_16 = arith.constant 1.000000e+00 : f32
    %23 = vector.broadcast %cst_16 : f32 to vector<2x32xf32>
    %24 = arith.subf %22, %23 : vector<2x32xf32>
    %25 = vector.extract_strided_slice %17 {offsets = [0, 96], sizes = [2, 32], strides = [1, 1]} : vector<2x128xf32> to vector<2x32xf32>
    %26 = arith.mulf %19, %9 : vector<2x32xf32>
    %27 = arith.mulf %18, %24 : vector<2x32xf32>
    %28 = arith.addf %26, %27 : vector<2x32xf32>
    %29 = math.tanh %28 : vector<2x32xf32>
    %30 = arith.mulf %25, %29 : vector<2x32xf32>
    %c0_17 = arith.constant 0 : index
    %c0_18 = arith.constant 0 : index
    %31 = vector.load %arg11[%c0_17, %c0_18] : memref<16x32xf32, #tpu.memory_space<vmem>>, vector<2x32xf32>
    tpu.vector_store %arg11[%c0_17, %c0_18], %30 {strides = array<i32>} : memref<16x32xf32, #tpu.memory_space<vmem>>, vector<2x32xf32>,
    %c2 = arith.constant 2 : index
    %c0_19 = arith.constant 0 : index
    %32 = vector.load %arg10[%c2, %c0_19] : memref<16x128xf32, #tpu.memory_space<vmem>>, vector<2x128xf32>
    %cst_20 = arith.constant dense<0.000000e+00> : vector<2x128xf32>
    %33 = tpu.matmul %30, %2, %cst_20 {dimension_numbers = #tpu.dot_dimension_numbers<[1], [0], [0], [1], [0, 0, 1, 1], [], []>} : vector<2x32xf32>, vector<32x128xf32>, vector<2x128xf32> -> vector<2x128xf32>
    %34 = arith.addf %32, %33 : vector<2x128xf32>
    %35 = arith.negf %34 : vector<2x128xf32>
    %36 = math.exp %35 : vector<2x128xf32>
    %cst_21 = arith.constant 1.000000e+00 : f32
    %37 = vector.broadcast %cst_21 : f32 to vector<2x128xf32>
    %38 = arith.addf %37, %36 : vector<2x128xf32>
    %39 = arith.divf %37, %38 : vector<2x128xf32>
    %40 = vector.extract_strided_slice %39 {offsets = [0, 0], sizes = [2, 32], strides = [1, 1]} : vector<2x128xf32> to vector<2x32xf32>
    %41 = vector.extract_strided_slice %39 {offsets = [0, 32], sizes = [2, 32], strides = [1, 1]} : vector<2x128xf32> to vector<2x32xf32>
    %42 = vector.extract_strided_slice %39 {offsets = [0, 64], sizes = [2, 32], strides = [1, 1]} : vector<2x128xf32> to vector<2x32xf32>
    %cst_22 = arith.constant 2.000000e+00 : f32
    %43 = vector.broadcast %cst_22 : f32 to vector<2x32xf32>
    %44 = arith.mulf %43, %42 : vector<2x32xf32>
    %cst_23 = arith.constant 1.000000e+00 : f32
    %45 = vector.broadcast %cst_23 : f32 to vector<2x32xf32>
    %46 = arith.subf %44, %45 : vector<2x32xf32>
    %47 = vector.extract_strided_slice %39 {offsets = [0, 96], sizes = [2, 32], strides = [1, 1]} : vector<2x128xf32> to vector<2x32xf32>
    %48 = arith.mulf %41, %28 : vector<2x32xf32>
    %49 = arith.mulf %40, %46 : vector<2x32xf32>
    %50 = arith.addf %48, %49 : vector<2x32xf32>
    %51 = math.tanh %50 : vector<2x32xf32>
    %52 = arith.mulf %47, %51 : vector<2x32xf32>
    %c2_24 = arith.constant 2 : index
    %c0_25 = arith.constant 0 : index
    %53 = vector.load %arg11[%c2_24, %c0_25] : memref<16x32xf32, #tpu.memory_space<vmem>>, vector<2x32xf32>
    tpu.vector_store %arg11[%c2_24, %c0_25], %52 {strides = array<i32>} : memref<16x32xf32, #tpu.memory_space<vmem>>, vector<2x32xf32>,
    %c4 = arith.constant 4 : index
    %c0_26 = arith.constant 0 : index
    %54 = vector.load %arg10[%c4, %c0_26] : memref<16x128xf32, #tpu.memory_space<vmem>>, vector<2x128xf32>
    %cst_27 = arith.constant dense<0.000000e+00> : vector<2x128xf32>
    %55 = tpu.matmul %52, %2, %cst_27 {dimension_numbers = #tpu.dot_dimension_numbers<[1], [0], [0], [1], [0, 0, 1, 1], [], []>} : vector<2x32xf32>, vector<32x128xf32>, vector<2x128xf32> -> vector<2x128xf32>
    %56 = arith.addf %54, %55 : vector<2x128xf32>
    %57 = arith.negf %56 : vector<2x128xf32>
    %58 = math.exp %57 : vector<2x128xf32>
    %cst_28 = arith.constant 1.000000e+00 : f32
    %59 = vector.broadcast %cst_28 : f32 to vector<2x128xf32>
    %60 = arith.addf %59, %58 : vector<2x128xf32>
    %61 = arith.divf %59, %60 : vector<2x128xf32>
    %62 = vector.extract_strided_slice %61 {offsets = [0, 0], sizes = [2, 32], strides = [1, 1]} : vector<2x128xf32> to vector<2x32xf32>
    %63 = vector.extract_strided_slice %61 {offsets = [0, 32], sizes = [2, 32], strides = [1, 1]} : vector<2x128xf32> to vector<2x32xf32>
    %64 = vector.extract_strided_slice %61 {offsets = [0, 64], sizes = [2, 32], strides = [1, 1]} : vector<2x128xf32> to vector<2x32xf32>
    %cst_29 = arith.constant 2.000000e+00 : f32
    %65 = vector.broadcast %cst_29 : f32 to vector<2x32xf32>
    %66 = arith.mulf %65, %64 : vector<2x32xf32>
    %cst_30 = arith.constant 1.000000e+00 : f32
    %67 = vector.broadcast %cst_30 : f32 to vector<2x32xf32>
    %68 = arith.subf %66, %67 : vector<2x32xf32>
    %69 = vector.extract_strided_slice %61 {offsets = [0, 96], sizes = [2, 32], strides = [1, 1]} : vector<2x128xf32> to vector<2x32xf32>
    %70 = arith.mulf %63, %50 : vector<2x32xf32>
    %71 = arith.mulf %62, %68 : vector<2x32xf32>
    %72 = arith.addf %70, %71 : vector<2x32xf32>
    %73 = math.tanh %72 : vector<2x32xf32>
    %74 = arith.mulf %69, %73 : vector<2x32xf32>
    %c4_31 = arith.constant 4 : index
    %c0_32 = arith.constant 0 : index
    %75 = vector.load %arg11[%c4_31, %c0_32] : memref<16x32xf32, #tpu.memory_space<vmem>>, vector<2x32xf32>
    tpu.vector_store %arg11[%c4_31, %c0_32], %74 {strides = array<i32>} : memref<16x32xf32, #tpu.memory_space<vmem>>, vector<2x32xf32>,
    %c6 = arith.constant 6 : index
    %c0_33 = arith.constant 0 : index
    %76 = vector.load %arg10[%c6, %c0_33] : memref<16x128xf32, #tpu.memory_space<vmem>>, vector<2x128xf32>
    %cst_34 = arith.constant dense<0.000000e+00> : vector<2x128xf32>
    %77 = tpu.matmul %74, %2, %cst_34 {dimension_numbers = #tpu.dot_dimension_numbers<[1], [0], [0], [1], [0, 0, 1, 1], [], []>} : vector<2x32xf32>, vector<32x128xf32>, vector<2x128xf32> -> vector<2x128xf32>
    %78 = arith.addf %76, %77 : vector<2x128xf32>
    %79 = arith.negf %78 : vector<2x128xf32>
    %80 = math.exp %79 : vector<2x128xf32>
    %cst_35 = arith.constant 1.000000e+00 : f32
    %81 = vector.broadcast %cst_35 : f32 to vector<2x128xf32>
    %82 = arith.addf %81, %80 : vector<2x128xf32>
    %83 = arith.divf %81, %82 : vector<2x128xf32>
    %84 = vector.extract_strided_slice %83 {offsets = [0, 0], sizes = [2, 32], strides = [1, 1]} : vector<2x128xf32> to vector<2x32xf32>
    %85 = vector.extract_strided_slice %83 {offsets = [0, 32], sizes = [2, 32], strides = [1, 1]} : vector<2x128xf32> to vector<2x32xf32>
    %86 = vector.extract_strided_slice %83 {offsets = [0, 64], sizes = [2, 32], strides = [1, 1]} : vector<2x128xf32> to vector<2x32xf32>
    %cst_36 = arith.constant 2.000000e+00 : f32
    %87 = vector.broadcast %cst_36 : f32 to vector<2x32xf32>
    %88 = arith.mulf %87, %86 : vector<2x32xf32>
    %cst_37 = arith.constant 1.000000e+00 : f32
    %89 = vector.broadcast %cst_37 : f32 to vector<2x32xf32>
    %90 = arith.subf %88, %89 : vector<2x32xf32>
    %91 = vector.extract_strided_slice %83 {offsets = [0, 96], sizes = [2, 32], strides = [1, 1]} : vector<2x128xf32> to vector<2x32xf32>
    %92 = arith.mulf %85, %72 : vector<2x32xf32>
    %93 = arith.mulf %84, %90 : vector<2x32xf32>
    %94 = arith.addf %92, %93 : vector<2x32xf32>
    %95 = math.tanh %94 : vector<2x32xf32>
    %96 = arith.mulf %91, %95 : vector<2x32xf32>
    %c6_38 = arith.constant 6 : index
    %c0_39 = arith.constant 0 : index
    %97 = vector.load %arg11[%c6_38, %c0_39] : memref<16x32xf32, #tpu.memory_space<vmem>>, vector<2x32xf32>
    tpu.vector_store %arg11[%c6_38, %c0_39], %96 {strides = array<i32>} : memref<16x32xf32, #tpu.memory_space<vmem>>, vector<2x32xf32>,
    %c8 = arith.constant 8 : index
    %c0_40 = arith.constant 0 : index
    %98 = vector.load %arg10[%c8, %c0_40] : memref<16x128xf32, #tpu.memory_space<vmem>>, vector<2x128xf32>
    %cst_41 = arith.constant dense<0.000000e+00> : vector<2x128xf32>
    %99 = tpu.matmul %96, %2, %cst_41 {dimension_numbers = #tpu.dot_dimension_numbers<[1], [0], [0], [1], [0, 0, 1, 1], [], []>} : vector<2x32xf32>, vector<32x128xf32>, vector<2x128xf32> -> vector<2x128xf32>
    %100 = arith.addf %98, %99 : vector<2x128xf32>
    %101 = arith.negf %100 : vector<2x128xf32>
    %102 = math.exp %101 : vector<2x128xf32>
    %cst_42 = arith.constant 1.000000e+00 : f32
    %103 = vector.broadcast %cst_42 : f32 to vector<2x128xf32>
    %104 = arith.addf %103, %102 : vector<2x128xf32>
    %105 = arith.divf %103, %104 : vector<2x128xf32>
    %106 = vector.extract_strided_slice %105 {offsets = [0, 0], sizes = [2, 32], strides = [1, 1]} : vector<2x128xf32> to vector<2x32xf32>
    %107 = vector.extract_strided_slice %105 {offsets = [0, 32], sizes = [2, 32], strides = [1, 1]} : vector<2x128xf32> to vector<2x32xf32>
    %108 = vector.extract_strided_slice %105 {offsets = [0, 64], sizes = [2, 32], strides = [1, 1]} : vector<2x128xf32> to vector<2x32xf32>
    %cst_43 = arith.constant 2.000000e+00 : f32
    %109 = vector.broadcast %cst_43 : f32 to vector<2x32xf32>
    %110 = arith.mulf %109, %108 : vector<2x32xf32>
    %cst_44 = arith.constant 1.000000e+00 : f32
    %111 = vector.broadcast %cst_44 : f32 to vector<2x32xf32>
    %112 = arith.subf %110, %111 : vector<2x32xf32>
    %113 = vector.extract_strided_slice %105 {offsets = [0, 96], sizes = [2, 32], strides = [1, 1]} : vector<2x128xf32> to vector<2x32xf32>
    %114 = arith.mulf %107, %94 : vector<2x32xf32>
    %115 = arith.mulf %106, %112 : vector<2x32xf32>
    %116 = arith.addf %114, %115 : vector<2x32xf32>
    %117 = math.tanh %116 : vector<2x32xf32>
    %118 = arith.mulf %113, %117 : vector<2x32xf32>
    %c8_45 = arith.constant 8 : index
    %c0_46 = arith.constant 0 : index
    %119 = vector.load %arg11[%c8_45, %c0_46] : memref<16x32xf32, #tpu.memory_space<vmem>>, vector<2x32xf32>
    tpu.vector_store %arg11[%c8_45, %c0_46], %118 {strides = array<i32>} : memref<16x32xf32, #tpu.memory_space<vmem>>, vector<2x32xf32>,
    %c10 = arith.constant 10 : index
    %c0_47 = arith.constant 0 : index
    %120 = vector.load %arg10[%c10, %c0_47] : memref<16x128xf32, #tpu.memory_space<vmem>>, vector<2x128xf32>
    %cst_48 = arith.constant dense<0.000000e+00> : vector<2x128xf32>
    %121 = tpu.matmul %118, %2, %cst_48 {dimension_numbers = #tpu.dot_dimension_numbers<[1], [0], [0], [1], [0, 0, 1, 1], [], []>} : vector<2x32xf32>, vector<32x128xf32>, vector<2x128xf32> -> vector<2x128xf32>
    %122 = arith.addf %120, %121 : vector<2x128xf32>
    %123 = arith.negf %122 : vector<2x128xf32>
    %124 = math.exp %123 : vector<2x128xf32>
    %cst_49 = arith.constant 1.000000e+00 : f32
    %125 = vector.broadcast %cst_49 : f32 to vector<2x128xf32>
    %126 = arith.addf %125, %124 : vector<2x128xf32>
    %127 = arith.divf %125, %126 : vector<2x128xf32>
    %128 = vector.extract_strided_slice %127 {offsets = [0, 0], sizes = [2, 32], strides = [1, 1]} : vector<2x128xf32> to vector<2x32xf32>
    %129 = vector.extract_strided_slice %127 {offsets = [0, 32], sizes = [2, 32], strides = [1, 1]} : vector<2x128xf32> to vector<2x32xf32>
    %130 = vector.extract_strided_slice %127 {offsets = [0, 64], sizes = [2, 32], strides = [1, 1]} : vector<2x128xf32> to vector<2x32xf32>
    %cst_50 = arith.constant 2.000000e+00 : f32
    %131 = vector.broadcast %cst_50 : f32 to vector<2x32xf32>
    %132 = arith.mulf %131, %130 : vector<2x32xf32>
    %cst_51 = arith.constant 1.000000e+00 : f32
    %133 = vector.broadcast %cst_51 : f32 to vector<2x32xf32>
    %134 = arith.subf %132, %133 : vector<2x32xf32>
    %135 = vector.extract_strided_slice %127 {offsets = [0, 96], sizes = [2, 32], strides = [1, 1]} : vector<2x128xf32> to vector<2x32xf32>
    %136 = arith.mulf %129, %116 : vector<2x32xf32>
    %137 = arith.mulf %128, %134 : vector<2x32xf32>
    %138 = arith.addf %136, %137 : vector<2x32xf32>
    %139 = math.tanh %138 : vector<2x32xf32>
    %140 = arith.mulf %135, %139 : vector<2x32xf32>
    %c10_52 = arith.constant 10 : index
    %c0_53 = arith.constant 0 : index
    %141 = vector.load %arg11[%c10_52, %c0_53] : memref<16x32xf32, #tpu.memory_space<vmem>>, vector<2x32xf32>
    tpu.vector_store %arg11[%c10_52, %c0_53], %140 {strides = array<i32>} : memref<16x32xf32, #tpu.memory_space<vmem>>, vector<2x32xf32>,
    %c12 = arith.constant 12 : index
    %c0_54 = arith.constant 0 : index
    %142 = vector.load %arg10[%c12, %c0_54] : memref<16x128xf32, #tpu.memory_space<vmem>>, vector<2x128xf32>
    %cst_55 = arith.constant dense<0.000000e+00> : vector<2x128xf32>
    %143 = tpu.matmul %140, %2, %cst_55 {dimension_numbers = #tpu.dot_dimension_numbers<[1], [0], [0], [1], [0, 0, 1, 1], [], []>} : vector<2x32xf32>, vector<32x128xf32>, vector<2x128xf32> -> vector<2x128xf32>
    %144 = arith.addf %142, %143 : vector<2x128xf32>
    %145 = arith.negf %144 : vector<2x128xf32>
    %146 = math.exp %145 : vector<2x128xf32>
    %cst_56 = arith.constant 1.000000e+00 : f32
    %147 = vector.broadcast %cst_56 : f32 to vector<2x128xf32>
    %148 = arith.addf %147, %146 : vector<2x128xf32>
    %149 = arith.divf %147, %148 : vector<2x128xf32>
    %150 = vector.extract_strided_slice %149 {offsets = [0, 0], sizes = [2, 32], strides = [1, 1]} : vector<2x128xf32> to vector<2x32xf32>
    %151 = vector.extract_strided_slice %149 {offsets = [0, 32], sizes = [2, 32], strides = [1, 1]} : vector<2x128xf32> to vector<2x32xf32>
    %152 = vector.extract_strided_slice %149 {offsets = [0, 64], sizes = [2, 32], strides = [1, 1]} : vector<2x128xf32> to vector<2x32xf32>
    %cst_57 = arith.constant 2.000000e+00 : f32
    %153 = vector.broadcast %cst_57 : f32 to vector<2x32xf32>
    %154 = arith.mulf %153, %152 : vector<2x32xf32>
    %cst_58 = arith.constant 1.000000e+00 : f32
    %155 = vector.broadcast %cst_58 : f32 to vector<2x32xf32>
    %156 = arith.subf %154, %155 : vector<2x32xf32>
    %157 = vector.extract_strided_slice %149 {offsets = [0, 96], sizes = [2, 32], strides = [1, 1]} : vector<2x128xf32> to vector<2x32xf32>
    %158 = arith.mulf %151, %138 : vector<2x32xf32>
    %159 = arith.mulf %150, %156 : vector<2x32xf32>
    %160 = arith.addf %158, %159 : vector<2x32xf32>
    %161 = math.tanh %160 : vector<2x32xf32>
    %162 = arith.mulf %157, %161 : vector<2x32xf32>
    %c12_59 = arith.constant 12 : index
    %c0_60 = arith.constant 0 : index
    %163 = vector.load %arg11[%c12_59, %c0_60] : memref<16x32xf32, #tpu.memory_space<vmem>>, vector<2x32xf32>
    tpu.vector_store %arg11[%c12_59, %c0_60], %162 {strides = array<i32>} : memref<16x32xf32, #tpu.memory_space<vmem>>, vector<2x32xf32>,
    %c14 = arith.constant 14 : index
    %c0_61 = arith.constant 0 : index
    %164 = vector.load %arg10[%c14, %c0_61] : memref<16x128xf32, #tpu.memory_space<vmem>>, vector<2x128xf32>
    %cst_62 = arith.constant dense<0.000000e+00> : vector<2x128xf32>
    %165 = tpu.matmul %162, %2, %cst_62 {dimension_numbers = #tpu.dot_dimension_numbers<[1], [0], [0], [1], [0, 0, 1, 1], [], []>} : vector<2x32xf32>, vector<32x128xf32>, vector<2x128xf32> -> vector<2x128xf32>
    %166 = arith.addf %164, %165 : vector<2x128xf32>
    %167 = arith.negf %166 : vector<2x128xf32>
    %168 = math.exp %167 : vector<2x128xf32>
    %cst_63 = arith.constant 1.000000e+00 : f32
    %169 = vector.broadcast %cst_63 : f32 to vector<2x128xf32>
    %170 = arith.addf %169, %168 : vector<2x128xf32>
    %171 = arith.divf %169, %170 : vector<2x128xf32>
    %172 = vector.extract_strided_slice %171 {offsets = [0, 0], sizes = [2, 32], strides = [1, 1]} : vector<2x128xf32> to vector<2x32xf32>
    %173 = vector.extract_strided_slice %171 {offsets = [0, 32], sizes = [2, 32], strides = [1, 1]} : vector<2x128xf32> to vector<2x32xf32>
    %174 = vector.extract_strided_slice %171 {offsets = [0, 64], sizes = [2, 32], strides = [1, 1]} : vector<2x128xf32> to vector<2x32xf32>
    %cst_64 = arith.constant 2.000000e+00 : f32
    %175 = vector.broadcast %cst_64 : f32 to vector<2x32xf32>
    %176 = arith.mulf %175, %174 : vector<2x32xf32>
    %cst_65 = arith.constant 1.000000e+00 : f32
    %177 = vector.broadcast %cst_65 : f32 to vector<2x32xf32>
    %178 = arith.subf %176, %177 : vector<2x32xf32>
    %179 = vector.extract_strided_slice %171 {offsets = [0, 96], sizes = [2, 32], strides = [1, 1]} : vector<2x128xf32> to vector<2x32xf32>
    %180 = arith.mulf %173, %160 : vector<2x32xf32>
    %181 = arith.mulf %172, %178 : vector<2x32xf32>
    %182 = arith.addf %180, %181 : vector<2x32xf32>
    %183 = math.tanh %182 : vector<2x32xf32>
    %184 = arith.mulf %179, %183 : vector<2x32xf32>
    %c14_66 = arith.constant 14 : index
    %c0_67 = arith.constant 0 : index
    %185 = vector.load %arg11[%c14_66, %c0_67] : memref<16x32xf32, #tpu.memory_space<vmem>>, vector<2x32xf32>
    tpu.vector_store %arg11[%c14_66, %c0_67], %184 {strides = array<i32>} : memref<16x32xf32, #tpu.memory_space<vmem>>, vector<2x32xf32>,
    %c0_68 = arith.constant 0 : index
    %c0_69 = arith.constant 0 : index
    %186 = vector.load %arg11[%c0_68, %c0_69] : memref<16x32xf32, #tpu.memory_space<vmem>>, vector<16x32xf32>
    %c0_70 = arith.constant 0 : index
    %c0_71 = arith.constant 0 : index
    %187 = vector.load %arg4[%c0_70, %c0_71] : memref<32x128xf32, #tpu.memory_space<vmem>>, vector<32x128xf32>
    %c0_72 = arith.constant 0 : index
    %c0_73 = arith.constant 0 : index
    %188 = vector.load %arg5[%c0_72, %c0_73] : memref<32x128xf32, #tpu.memory_space<vmem>>, vector<32x128xf32>
    %c0_74 = arith.constant 0 : index
    %c0_75 = arith.constant 0 : index
    %189 = vector.load %arg6[%c0_74, %c0_75] : memref<1x128xf32, #tpu.memory_space<vmem>>, vector<1x128xf32>
    %cst_76 = arith.constant dense<0.000000e+00> : vector<16x128xf32>
    %190 = tpu.matmul %186, %187, %cst_76 {dimension_numbers = #tpu.dot_dimension_numbers<[1], [0], [0], [1], [0, 0, 1, 1], [], []>} : vector<16x32xf32>, vector<32x128xf32>, vector<16x128xf32> -> vector<16x128xf32>
    %191 = vector.broadcast %189 : vector<1x128xf32> to vector<16x128xf32>
    %192 = arith.addf %190, %191 : vector<16x128xf32>
    %c0_77 = arith.constant 0 : index
    %c0_78 = arith.constant 0 : index
    %193 = vector.load %arg10[%c0_77, %c0_78] : memref<16x128xf32, #tpu.memory_space<vmem>>, vector<16x128xf32>
    tpu.vector_store %arg10[%c0_77, %c0_78], %192 {strides = array<i32>} : memref<16x128xf32, #tpu.memory_space<vmem>>, vector<16x128xf32>,
    %cst_79 = arith.constant 0.000000e+00 : f32
    %194 = vector.broadcast %cst_79 : f32 to vector<2x32xf32>
    %cst_80 = arith.constant 0.000000e+00 : f32
    %195 = vector.broadcast %cst_80 : f32 to vector<2x32xf32>
    %c0_81 = arith.constant 0 : index
    %c0_82 = arith.constant 0 : index
    %196 = vector.load %arg10[%c0_81, %c0_82] : memref<16x128xf32, #tpu.memory_space<vmem>>, vector<2x128xf32>
    %cst_83 = arith.constant dense<0.000000e+00> : vector<2x128xf32>
    %197 = tpu.matmul %194, %188, %cst_83 {dimension_numbers = #tpu.dot_dimension_numbers<[1], [0], [0], [1], [0, 0, 1, 1], [], []>} : vector<2x32xf32>, vector<32x128xf32>, vector<2x128xf32> -> vector<2x128xf32>
    %198 = arith.addf %196, %197 : vector<2x128xf32>
    %199 = arith.negf %198 : vector<2x128xf32>
    %200 = math.exp %199 : vector<2x128xf32>
    %cst_84 = arith.constant 1.000000e+00 : f32
    %201 = vector.broadcast %cst_84 : f32 to vector<2x128xf32>
    %202 = arith.addf %201, %200 : vector<2x128xf32>
    %203 = arith.divf %201, %202 : vector<2x128xf32>
    %204 = vector.extract_strided_slice %203 {offsets = [0, 0], sizes = [2, 32], strides = [1, 1]} : vector<2x128xf32> to vector<2x32xf32>
    %205 = vector.extract_strided_slice %203 {offsets = [0, 32], sizes = [2, 32], strides = [1, 1]} : vector<2x128xf32> to vector<2x32xf32>
    %206 = vector.extract_strided_slice %203 {offsets = [0, 64], sizes = [2, 32], strides = [1, 1]} : vector<2x128xf32> to vector<2x32xf32>
    %cst_85 = arith.constant 2.000000e+00 : f32
    %207 = vector.broadcast %cst_85 : f32 to vector<2x32xf32>
    %208 = arith.mulf %207, %206 : vector<2x32xf32>
    %cst_86 = arith.constant 1.000000e+00 : f32
    %209 = vector.broadcast %cst_86 : f32 to vector<2x32xf32>
    %210 = arith.subf %208, %209 : vector<2x32xf32>
    %211 = vector.extract_strided_slice %203 {offsets = [0, 96], sizes = [2, 32], strides = [1, 1]} : vector<2x128xf32> to vector<2x32xf32>
    %212 = arith.mulf %205, %195 : vector<2x32xf32>
    %213 = arith.mulf %204, %210 : vector<2x32xf32>
    %214 = arith.addf %212, %213 : vector<2x32xf32>
    %215 = math.tanh %214 : vector<2x32xf32>
    %216 = arith.mulf %211, %215 : vector<2x32xf32>
    %c2_87 = arith.constant 2 : index
    %c0_88 = arith.constant 0 : index
    %217 = vector.load %arg10[%c2_87, %c0_88] : memref<16x128xf32, #tpu.memory_space<vmem>>, vector<2x128xf32>
    %cst_89 = arith.constant dense<0.000000e+00> : vector<2x128xf32>
    %218 = tpu.matmul %216, %188, %cst_89 {dimension_numbers = #tpu.dot_dimension_numbers<[1], [0], [0], [1], [0, 0, 1, 1], [], []>} : vector<2x32xf32>, vector<32x128xf32>, vector<2x128xf32> -> vector<2x128xf32>
    %219 = arith.addf %217, %218 : vector<2x128xf32>
    %220 = arith.negf %219 : vector<2x128xf32>
    %221 = math.exp %220 : vector<2x128xf32>
    %cst_90 = arith.constant 1.000000e+00 : f32
    %222 = vector.broadcast %cst_90 : f32 to vector<2x128xf32>
    %223 = arith.addf %222, %221 : vector<2x128xf32>
    %224 = arith.divf %222, %223 : vector<2x128xf32>
    %225 = vector.extract_strided_slice %224 {offsets = [0, 0], sizes = [2, 32], strides = [1, 1]} : vector<2x128xf32> to vector<2x32xf32>
    %226 = vector.extract_strided_slice %224 {offsets = [0, 32], sizes = [2, 32], strides = [1, 1]} : vector<2x128xf32> to vector<2x32xf32>
    %227 = vector.extract_strided_slice %224 {offsets = [0, 64], sizes = [2, 32], strides = [1, 1]} : vector<2x128xf32> to vector<2x32xf32>
    %cst_91 = arith.constant 2.000000e+00 : f32
    %228 = vector.broadcast %cst_91 : f32 to vector<2x32xf32>
    %229 = arith.mulf %228, %227 : vector<2x32xf32>
    %cst_92 = arith.constant 1.000000e+00 : f32
    %230 = vector.broadcast %cst_92 : f32 to vector<2x32xf32>
    %231 = arith.subf %229, %230 : vector<2x32xf32>
    %232 = vector.extract_strided_slice %224 {offsets = [0, 96], sizes = [2, 32], strides = [1, 1]} : vector<2x128xf32> to vector<2x32xf32>
    %233 = arith.mulf %226, %214 : vector<2x32xf32>
    %234 = arith.mulf %225, %231 : vector<2x32xf32>
    %235 = arith.addf %233, %234 : vector<2x32xf32>
    %236 = math.tanh %235 : vector<2x32xf32>
    %237 = arith.mulf %232, %236 : vector<2x32xf32>
    %c4_93 = arith.constant 4 : index
    %c0_94 = arith.constant 0 : index
    %238 = vector.load %arg10[%c4_93, %c0_94] : memref<16x128xf32, #tpu.memory_space<vmem>>, vector<2x128xf32>
    %cst_95 = arith.constant dense<0.000000e+00> : vector<2x128xf32>
    %239 = tpu.matmul %237, %188, %cst_95 {dimension_numbers = #tpu.dot_dimension_numbers<[1], [0], [0], [1], [0, 0, 1, 1], [], []>} : vector<2x32xf32>, vector<32x128xf32>, vector<2x128xf32> -> vector<2x128xf32>
    %240 = arith.addf %238, %239 : vector<2x128xf32>
    %241 = arith.negf %240 : vector<2x128xf32>
    %242 = math.exp %241 : vector<2x128xf32>
    %cst_96 = arith.constant 1.000000e+00 : f32
    %243 = vector.broadcast %cst_96 : f32 to vector<2x128xf32>
    %244 = arith.addf %243, %242 : vector<2x128xf32>
    %245 = arith.divf %243, %244 : vector<2x128xf32>
    %246 = vector.extract_strided_slice %245 {offsets = [0, 0], sizes = [2, 32], strides = [1, 1]} : vector<2x128xf32> to vector<2x32xf32>
    %247 = vector.extract_strided_slice %245 {offsets = [0, 32], sizes = [2, 32], strides = [1, 1]} : vector<2x128xf32> to vector<2x32xf32>
    %248 = vector.extract_strided_slice %245 {offsets = [0, 64], sizes = [2, 32], strides = [1, 1]} : vector<2x128xf32> to vector<2x32xf32>
    %cst_97 = arith.constant 2.000000e+00 : f32
    %249 = vector.broadcast %cst_97 : f32 to vector<2x32xf32>
    %250 = arith.mulf %249, %248 : vector<2x32xf32>
    %cst_98 = arith.constant 1.000000e+00 : f32
    %251 = vector.broadcast %cst_98 : f32 to vector<2x32xf32>
    %252 = arith.subf %250, %251 : vector<2x32xf32>
    %253 = vector.extract_strided_slice %245 {offsets = [0, 96], sizes = [2, 32], strides = [1, 1]} : vector<2x128xf32> to vector<2x32xf32>
    %254 = arith.mulf %247, %235 : vector<2x32xf32>
    %255 = arith.mulf %246, %252 : vector<2x32xf32>
    %256 = arith.addf %254, %255 : vector<2x32xf32>
    %257 = math.tanh %256 : vector<2x32xf32>
    %258 = arith.mulf %253, %257 : vector<2x32xf32>
    %c6_99 = arith.constant 6 : index
    %c0_100 = arith.constant 0 : index
    %259 = vector.load %arg10[%c6_99, %c0_100] : memref<16x128xf32, #tpu.memory_space<vmem>>, vector<2x128xf32>
    %cst_101 = arith.constant dense<0.000000e+00> : vector<2x128xf32>
    %260 = tpu.matmul %258, %188, %cst_101 {dimension_numbers = #tpu.dot_dimension_numbers<[1], [0], [0], [1], [0, 0, 1, 1], [], []>} : vector<2x32xf32>, vector<32x128xf32>, vector<2x128xf32> -> vector<2x128xf32>
    %261 = arith.addf %259, %260 : vector<2x128xf32>
    %262 = arith.negf %261 : vector<2x128xf32>
    %263 = math.exp %262 : vector<2x128xf32>
    %cst_102 = arith.constant 1.000000e+00 : f32
    %264 = vector.broadcast %cst_102 : f32 to vector<2x128xf32>
    %265 = arith.addf %264, %263 : vector<2x128xf32>
    %266 = arith.divf %264, %265 : vector<2x128xf32>
    %267 = vector.extract_strided_slice %266 {offsets = [0, 0], sizes = [2, 32], strides = [1, 1]} : vector<2x128xf32> to vector<2x32xf32>
    %268 = vector.extract_strided_slice %266 {offsets = [0, 32], sizes = [2, 32], strides = [1, 1]} : vector<2x128xf32> to vector<2x32xf32>
    %269 = vector.extract_strided_slice %266 {offsets = [0, 64], sizes = [2, 32], strides = [1, 1]} : vector<2x128xf32> to vector<2x32xf32>
    %cst_103 = arith.constant 2.000000e+00 : f32
    %270 = vector.broadcast %cst_103 : f32 to vector<2x32xf32>
    %271 = arith.mulf %270, %269 : vector<2x32xf32>
    %cst_104 = arith.constant 1.000000e+00 : f32
    %272 = vector.broadcast %cst_104 : f32 to vector<2x32xf32>
    %273 = arith.subf %271, %272 : vector<2x32xf32>
    %274 = vector.extract_strided_slice %266 {offsets = [0, 96], sizes = [2, 32], strides = [1, 1]} : vector<2x128xf32> to vector<2x32xf32>
    %275 = arith.mulf %268, %256 : vector<2x32xf32>
    %276 = arith.mulf %267, %273 : vector<2x32xf32>
    %277 = arith.addf %275, %276 : vector<2x32xf32>
    %278 = math.tanh %277 : vector<2x32xf32>
    %279 = arith.mulf %274, %278 : vector<2x32xf32>
    %c8_105 = arith.constant 8 : index
    %c0_106 = arith.constant 0 : index
    %280 = vector.load %arg10[%c8_105, %c0_106] : memref<16x128xf32, #tpu.memory_space<vmem>>, vector<2x128xf32>
    %cst_107 = arith.constant dense<0.000000e+00> : vector<2x128xf32>
    %281 = tpu.matmul %279, %188, %cst_107 {dimension_numbers = #tpu.dot_dimension_numbers<[1], [0], [0], [1], [0, 0, 1, 1], [], []>} : vector<2x32xf32>, vector<32x128xf32>, vector<2x128xf32> -> vector<2x128xf32>
    %282 = arith.addf %280, %281 : vector<2x128xf32>
    %283 = arith.negf %282 : vector<2x128xf32>
    %284 = math.exp %283 : vector<2x128xf32>
    %cst_108 = arith.constant 1.000000e+00 : f32
    %285 = vector.broadcast %cst_108 : f32 to vector<2x128xf32>
    %286 = arith.addf %285, %284 : vector<2x128xf32>
    %287 = arith.divf %285, %286 : vector<2x128xf32>
    %288 = vector.extract_strided_slice %287 {offsets = [0, 0], sizes = [2, 32], strides = [1, 1]} : vector<2x128xf32> to vector<2x32xf32>
    %289 = vector.extract_strided_slice %287 {offsets = [0, 32], sizes = [2, 32], strides = [1, 1]} : vector<2x128xf32> to vector<2x32xf32>
    %290 = vector.extract_strided_slice %287 {offsets = [0, 64], sizes = [2, 32], strides = [1, 1]} : vector<2x128xf32> to vector<2x32xf32>
    %cst_109 = arith.constant 2.000000e+00 : f32
    %291 = vector.broadcast %cst_109 : f32 to vector<2x32xf32>
    %292 = arith.mulf %291, %290 : vector<2x32xf32>
    %cst_110 = arith.constant 1.000000e+00 : f32
    %293 = vector.broadcast %cst_110 : f32 to vector<2x32xf32>
    %294 = arith.subf %292, %293 : vector<2x32xf32>
    %295 = vector.extract_strided_slice %287 {offsets = [0, 96], sizes = [2, 32], strides = [1, 1]} : vector<2x128xf32> to vector<2x32xf32>
    %296 = arith.mulf %289, %277 : vector<2x32xf32>
    %297 = arith.mulf %288, %294 : vector<2x32xf32>
    %298 = arith.addf %296, %297 : vector<2x32xf32>
    %299 = math.tanh %298 : vector<2x32xf32>
    %300 = arith.mulf %295, %299 : vector<2x32xf32>
    %c10_111 = arith.constant 10 : index
    %c0_112 = arith.constant 0 : index
    %301 = vector.load %arg10[%c10_111, %c0_112] : memref<16x128xf32, #tpu.memory_space<vmem>>, vector<2x128xf32>
    %cst_113 = arith.constant dense<0.000000e+00> : vector<2x128xf32>
    %302 = tpu.matmul %300, %188, %cst_113 {dimension_numbers = #tpu.dot_dimension_numbers<[1], [0], [0], [1], [0, 0, 1, 1], [], []>} : vector<2x32xf32>, vector<32x128xf32>, vector<2x128xf32> -> vector<2x128xf32>
    %303 = arith.addf %301, %302 : vector<2x128xf32>
    %304 = arith.negf %303 : vector<2x128xf32>
    %305 = math.exp %304 : vector<2x128xf32>
    %cst_114 = arith.constant 1.000000e+00 : f32
    %306 = vector.broadcast %cst_114 : f32 to vector<2x128xf32>
    %307 = arith.addf %306, %305 : vector<2x128xf32>
    %308 = arith.divf %306, %307 : vector<2x128xf32>
    %309 = vector.extract_strided_slice %308 {offsets = [0, 0], sizes = [2, 32], strides = [1, 1]} : vector<2x128xf32> to vector<2x32xf32>
    %310 = vector.extract_strided_slice %308 {offsets = [0, 32], sizes = [2, 32], strides = [1, 1]} : vector<2x128xf32> to vector<2x32xf32>
    %311 = vector.extract_strided_slice %308 {offsets = [0, 64], sizes = [2, 32], strides = [1, 1]} : vector<2x128xf32> to vector<2x32xf32>
    %cst_115 = arith.constant 2.000000e+00 : f32
    %312 = vector.broadcast %cst_115 : f32 to vector<2x32xf32>
    %313 = arith.mulf %312, %311 : vector<2x32xf32>
    %cst_116 = arith.constant 1.000000e+00 : f32
    %314 = vector.broadcast %cst_116 : f32 to vector<2x32xf32>
    %315 = arith.subf %313, %314 : vector<2x32xf32>
    %316 = vector.extract_strided_slice %308 {offsets = [0, 96], sizes = [2, 32], strides = [1, 1]} : vector<2x128xf32> to vector<2x32xf32>
    %317 = arith.mulf %310, %298 : vector<2x32xf32>
    %318 = arith.mulf %309, %315 : vector<2x32xf32>
    %319 = arith.addf %317, %318 : vector<2x32xf32>
    %320 = math.tanh %319 : vector<2x32xf32>
    %321 = arith.mulf %316, %320 : vector<2x32xf32>
    %c12_117 = arith.constant 12 : index
    %c0_118 = arith.constant 0 : index
    %322 = vector.load %arg10[%c12_117, %c0_118] : memref<16x128xf32, #tpu.memory_space<vmem>>, vector<2x128xf32>
    %cst_119 = arith.constant dense<0.000000e+00> : vector<2x128xf32>
    %323 = tpu.matmul %321, %188, %cst_119 {dimension_numbers = #tpu.dot_dimension_numbers<[1], [0], [0], [1], [0, 0, 1, 1], [], []>} : vector<2x32xf32>, vector<32x128xf32>, vector<2x128xf32> -> vector<2x128xf32>
    %324 = arith.addf %322, %323 : vector<2x128xf32>
    %325 = arith.negf %324 : vector<2x128xf32>
    %326 = math.exp %325 : vector<2x128xf32>
    %cst_120 = arith.constant 1.000000e+00 : f32
    %327 = vector.broadcast %cst_120 : f32 to vector<2x128xf32>
    %328 = arith.addf %327, %326 : vector<2x128xf32>
    %329 = arith.divf %327, %328 : vector<2x128xf32>
    %330 = vector.extract_strided_slice %329 {offsets = [0, 0], sizes = [2, 32], strides = [1, 1]} : vector<2x128xf32> to vector<2x32xf32>
    %331 = vector.extract_strided_slice %329 {offsets = [0, 32], sizes = [2, 32], strides = [1, 1]} : vector<2x128xf32> to vector<2x32xf32>
    %332 = vector.extract_strided_slice %329 {offsets = [0, 64], sizes = [2, 32], strides = [1, 1]} : vector<2x128xf32> to vector<2x32xf32>
    %cst_121 = arith.constant 2.000000e+00 : f32
    %333 = vector.broadcast %cst_121 : f32 to vector<2x32xf32>
    %334 = arith.mulf %333, %332 : vector<2x32xf32>
    %cst_122 = arith.constant 1.000000e+00 : f32
    %335 = vector.broadcast %cst_122 : f32 to vector<2x32xf32>
    %336 = arith.subf %334, %335 : vector<2x32xf32>
    %337 = vector.extract_strided_slice %329 {offsets = [0, 96], sizes = [2, 32], strides = [1, 1]} : vector<2x128xf32> to vector<2x32xf32>
    %338 = arith.mulf %331, %319 : vector<2x32xf32>
    %339 = arith.mulf %330, %336 : vector<2x32xf32>
    %340 = arith.addf %338, %339 : vector<2x32xf32>
    %341 = math.tanh %340 : vector<2x32xf32>
    %342 = arith.mulf %337, %341 : vector<2x32xf32>
    %c14_123 = arith.constant 14 : index
    %c0_124 = arith.constant 0 : index
    %343 = vector.load %arg10[%c14_123, %c0_124] : memref<16x128xf32, #tpu.memory_space<vmem>>, vector<2x128xf32>
    %cst_125 = arith.constant dense<0.000000e+00> : vector<2x128xf32>
    %344 = tpu.matmul %342, %188, %cst_125 {dimension_numbers = #tpu.dot_dimension_numbers<[1], [0], [0], [1], [0, 0, 1, 1], [], []>} : vector<2x32xf32>, vector<32x128xf32>, vector<2x128xf32> -> vector<2x128xf32>
    %345 = arith.addf %343, %344 : vector<2x128xf32>
    %346 = arith.negf %345 : vector<2x128xf32>
    %347 = math.exp %346 : vector<2x128xf32>
    %cst_126 = arith.constant 1.000000e+00 : f32
    %348 = vector.broadcast %cst_126 : f32 to vector<2x128xf32>
    %349 = arith.addf %348, %347 : vector<2x128xf32>
    %350 = arith.divf %348, %349 : vector<2x128xf32>
    %351 = vector.extract_strided_slice %350 {offsets = [0, 0], sizes = [2, 32], strides = [1, 1]} : vector<2x128xf32> to vector<2x32xf32>
    %352 = vector.extract_strided_slice %350 {offsets = [0, 32], sizes = [2, 32], strides = [1, 1]} : vector<2x128xf32> to vector<2x32xf32>
    %353 = vector.extract_strided_slice %350 {offsets = [0, 64], sizes = [2, 32], strides = [1, 1]} : vector<2x128xf32> to vector<2x32xf32>
    %cst_127 = arith.constant 2.000000e+00 : f32
    %354 = vector.broadcast %cst_127 : f32 to vector<2x32xf32>
    %355 = arith.mulf %354, %353 : vector<2x32xf32>
    %cst_128 = arith.constant 1.000000e+00 : f32
    %356 = vector.broadcast %cst_128 : f32 to vector<2x32xf32>
    %357 = arith.subf %355, %356 : vector<2x32xf32>
    %358 = vector.extract_strided_slice %350 {offsets = [0, 96], sizes = [2, 32], strides = [1, 1]} : vector<2x128xf32> to vector<2x32xf32>
    %359 = arith.mulf %352, %340 : vector<2x32xf32>
    %360 = arith.mulf %351, %357 : vector<2x32xf32>
    %361 = arith.addf %359, %360 : vector<2x32xf32>
    %362 = math.tanh %361 : vector<2x32xf32>
    %363 = arith.mulf %358, %362 : vector<2x32xf32>
    %c0_129 = arith.constant 0 : index
    %c0_130 = arith.constant 0 : index
    %364 = vector.load %arg7[%c0_129, %c0_130] : memref<32x4xf32, #tpu.memory_space<vmem>>, vector<32x4xf32>
    %cst_131 = arith.constant dense<0.000000e+00> : vector<2x4xf32>
    %365 = tpu.matmul %363, %364, %cst_131 {dimension_numbers = #tpu.dot_dimension_numbers<[1], [0], [0], [1], [0, 0, 1, 1], [], []>} : vector<2x32xf32>, vector<32x4xf32>, vector<2x4xf32> -> vector<2x4xf32>
    %c0_132 = arith.constant 0 : index
    %c0_133 = arith.constant 0 : index
    %366 = vector.load %arg8[%c0_132, %c0_133] : memref<1x4xf32, #tpu.memory_space<vmem>>, vector<1x4xf32>
    %367 = vector.broadcast %366 : vector<1x4xf32> to vector<2x4xf32>
    %368 = arith.addf %365, %367 : vector<2x4xf32>
    %c0_134 = arith.constant 0 : index
    %c0_135 = arith.constant 0 : index
    %369 = vector.load %arg9[%c0_134, %c0_135] : memref<2x4xf32, #tpu.memory_space<vmem>>, vector<2x4xf32>
    tpu.vector_store %arg9[%c0_134, %c0_135], %368 {strides = array<i32>} : memref<2x4xf32, #tpu.memory_space<vmem>>, vector<2x4xf32>,
    return
  }
}

</mosaic_0001>

<llo_original>
// kernel: lstm_model_forward.1
$region0: #{lstm_model_forward.1}
  #allocation0 [shape = 'u32[]', space=smem, size = 0x4, offset = 0x4, fixed_abs, tag = 'smem constant byte address 0x4 - core index']
  #allocation1 [shape = 'u32[144,128]{1,0:T(1,128)}', space=vmem, size = 0x12000, scoped, tag = 'internal scratch']
  #allocation2 [shape = 'f32[16,128]{1,0:T(8,128)}', space=vmem, size = 0x2000, scoped, tag = 'scratch operand']
  #allocation3 [shape = 'f32[16,32]{1,0:T(8,128)}', space=vmem, size = 0x2000, scoped, tag = 'scratch operand']
  %s0 = inlined_call_operand.vmem [shape: f32[16,8], index: 0, kind: input, shape index: {}]
  %s1 = inlined_call_operand.vmem [shape: f32[8,128], index: 1, kind: input, shape index: {}]
  %s2 = inlined_call_operand.vmem [shape: f32[32,128], index: 2, kind: input, shape index: {}]
  %s3 = inlined_call_operand.vmem [shape: f32[1,128], index: 3, kind: input, shape index: {}]
  %s4 = inlined_call_operand.vmem [shape: f32[32,128], index: 4, kind: input, shape index: {}]
  %s5 = inlined_call_operand.vmem [shape: f32[32,128], index: 5, kind: input, shape index: {}]
  %s6 = inlined_call_operand.vmem [shape: f32[1,128], index: 6, kind: input, shape index: {}]
  %s7 = inlined_call_operand.vmem [shape: f32[32,4], index: 7, kind: input, shape index: {}]
  %s8 = inlined_call_operand.vmem [shape: f32[1,4], index: 8, kind: input, shape index: {}]
  %s9 = inlined_call_operand.hbm [shape: f32[2,4], index: 9, kind: output, shape index: {}]
  %s10 = sld [smem:[#allocation0]]
  $region46: #{lstm_model_forward.1} parent=0
    _
  %s12 = ssub.s32 1, %s10
  %s13 = scalar_select 0, %s12, %s10
  $region1: #{lstm_model_forward.1} parent=0
    #allocation4 [shape = 'u8[1024]{0}', space=vmem, size = 0x400, scoped, tag = 'output window, operand 0, single buffered']
    #allocation5 [shape = 's32[1]{0}', space=sflag, size = 0x4, scoped, tag = 'scoped memory for lstm_model_forward.1']
    %14 = vsyncpa [#allocation5], 0
    // Predicated region
    $region2: #{lstm_model_forward.1} parent=1 // pred_check
      _
    $region3: #{lstm_model_forward.1} parent=1 // pred_check_branch
      %16 = sbr.rel (0) target = $region5
    $region4: #{lstm_model_forward.1} parent=1 // pred_region
      _
    $region5: #{lstm_model_forward.1} parent=1 // pred_fallthru
      _
    // Predicated region
    $region6: #{lstm_model_forward.1} parent=1 // pred_check
      _
    $region7: #{lstm_model_forward.1} parent=1 // pred_check_branch
      %18 = sbr.rel (0) target = $region9
    $region8: #{lstm_model_forward.1} parent=1 // pred_region
      _
    $region9: #{lstm_model_forward.1} parent=1 // pred_fallthru
      _
    // Predicated region
    $region10: #{lstm_model_forward.1} parent=1 // pred_check
      _
    $region11: #{lstm_model_forward.1} parent=1 // pred_check_branch
      %20 = sbr.rel (0) target = $region13
    $region12: #{lstm_model_forward.1} parent=1 // pred_region
      _
    $region13: #{lstm_model_forward.1} parent=1 // pred_fallthru
      _
    // Predicated region
    $region14: #{lstm_model_forward.1} parent=1 // pred_check
      _
    $region15: #{lstm_model_forward.1} parent=1 // pred_check_branch
      %22 = sbr.rel (0) target = $region17
    $region16: #{lstm_model_forward.1} parent=1 // pred_region
      _
    $region17: #{lstm_model_forward.1} parent=1 // pred_fallthru
      _
    // Predicated region
    $region18: #{lstm_model_forward.1} parent=1 // pred_check
      _
    $region19: #{lstm_model_forward.1} parent=1 // pred_check_branch
      %24 = sbr.rel (0) target = $region21
    $region20: #{lstm_model_forward.1} parent=1 // pred_region
      _
    $region21: #{lstm_model_forward.1} parent=1 // pred_fallthru
      _
    // Predicated region
    $region22: #{lstm_model_forward.1} parent=1 // pred_check
      _
    $region23: #{lstm_model_forward.1} parent=1 // pred_check_branch
      %26 = sbr.rel (0) target = $region25
    $region24: #{lstm_model_forward.1} parent=1 // pred_region
      _
    $region25: #{lstm_model_forward.1} parent=1 // pred_fallthru
      _
    // Predicated region
    $region26: #{lstm_model_forward.1} parent=1 // pred_check
      _
    $region27: #{lstm_model_forward.1} parent=1 // pred_check_branch
      %28 = sbr.rel (0) target = $region29
    $region28: #{lstm_model_forward.1} parent=1 // pred_region
      _
    $region29: #{lstm_model_forward.1} parent=1 // pred_fallthru
      _
    // Predicated region
    $region30: #{lstm_model_forward.1} parent=1 // pred_check
      _
    $region31: #{lstm_model_forward.1} parent=1 // pred_check_branch
      %30 = sbr.rel (0) target = $region33
    $region32: #{lstm_model_forward.1} parent=1 // pred_region
      _
    $region33: #{lstm_model_forward.1} parent=1 // pred_fallthru
      _
    // Predicated region
    $region34: #{lstm_model_forward.1} parent=1 // pred_check
      _
    $region35: #{lstm_model_forward.1} parent=1 // pred_check_branch
      %32 = sbr.rel (0) target = $region37
    $region36: #{lstm_model_forward.1} parent=1 // pred_region
      _
    $region37: #{lstm_model_forward.1} parent=1 // pred_fallthru
      _
    %v33 = vld [vmem:[%s0] sm:$0xff]
    %v34 = vld [vmem:[%s0 + $0x8] sm:$0xff]
    %v35 = vld [vmem:[%s1] sm:$0xff]
    %v36 = vld [vmem:[%s2] sm:$0xff]
    %v37 = vld [vmem:[%s2 + $0x8] sm:$0xff]
    %v38 = vld [vmem:[%s2 + $0x10] sm:$0xff]
    %v39 = vld [vmem:[%s2 + $0x18] sm:$0xff]
    %v40 = vld [vmem:[%s3] sm:$0x1]
    %v42 = vlaneseq
    %v43 = vshrl.u32 %v42, 7
    %v44 = vsub.s32 0, %v43
    %v45 = vrot.slane %v40, %v44
    %vm47 = vcmask 64512
    %v49 = vsel %vm47, %v33, 0
    %v52 = vsel %vm47, %v34, 0
    %54 = vmatprep.subr.mxu0 0.0
    %55 = vmatpush1.msra.mxu0 0.0
    %56 = vmatprep.subr.mxu0 0.0
    %57 = vmatpush1.msra.mxu0 0.0
    %58 = vmatprep.subr.mxu0 0.0
    %59 = vmatpush1.msra.mxu0 0.0
    %60 = vmatprep.subr.mxu0 0.0
    %61 = vmatpush1.msra.mxu0 0.0
    %62 = vmatprep.subr.mxu0 0.0
    %63 = vmatpush1.msra.mxu0 0.0
    %64 = vmatprep.subr.mxu0 0.0
    %65 = vmatpush1.msra.mxu0 0.0
    %66 = vmatprep.subr.mxu0 0.0
    %67 = vmatpush1.msra.mxu0 0.0
    %68 = vmatprep.subr.mxu0 0.0
    %69 = vmatpush1.msra.mxu0 0.0
    %70 = vmatprep.subr.mxu0 0.0
    %71 = vmatpush1.msra.mxu0 0.0
    %72 = vmatprep.subr.mxu0 0.0
    %73 = vmatpush1.msra.mxu0 0.0
    %74 = vmatprep.subr.mxu0 0.0
    %75 = vmatpush1.msra.mxu0 0.0
    %76 = vmatprep.subr.mxu0 0.0
    %77 = vmatpush1.msra.mxu0 0.0
    %78 = vmatprep.subr.mxu0 0.0
    %79 = vmatpush1.msra.mxu0 0.0
    %80 = vmatprep.subr.mxu0 0.0
    %81 = vmatpush1.msra.mxu0 0.0
    %82 = vmatprep.subr.mxu0 0.0
    %83 = vmatpush1.msra.mxu0 0.0
    %84 = vmatprep.subr.mxu0 0.0
    %85 = vmatpush1.msra.mxu0 %v35
    %86 = vmatprep.subr.mxu0 0.0
    %87 = vmatpush2.msra.mxu0 0.0
    %88 = vmatprep.subr.mxu0 0.0
    %89 = vmatpush2.msra.mxu0 0.0
    %90 = vmatprep.subr.mxu0 0.0
    %91 = vmatpush2.msra.mxu0 0.0
    %92 = vmatprep.subr.mxu0 0.0
    %93 = vmatpush2.msra.mxu0 0.0
    %94 = vmatprep.subr.mxu0 0.0
    %95 = vmatpush2.msra.mxu0 0.0
    %96 = vmatprep.subr.mxu0 0.0
    %97 = vmatpush2.msra.mxu0 0.0
    %98 = vmatprep.subr.mxu0 0.0
    %99 = vmatpush2.msra.mxu0 0.0
    %100 = vmatprep.subr.mxu0 0.0
    %101 = vmatpush2.msra.mxu0 0.0
    %102 = vmatprep.subr.mxu0 0.0
    %103 = vmatpush2.msra.mxu0 0.0
    %104 = vmatprep.subr.mxu0 0.0
    %105 = vmatpush2.msra.mxu0 0.0
    %106 = vmatprep.subr.mxu0 0.0
    %107 = vmatpush2.msra.mxu0 0.0
    %108 = vmatprep.subr.mxu0 0.0
    %109 = vmatpush2.msra.mxu0 0.0
    %110 = vmatprep.subr.mxu0 0.0
    %111 = vmatpush2.msra.mxu0 0.0
    %112 = vmatprep.subr.mxu0 0.0
    %113 = vmatpush2.msra.mxu0 0.0
    %114 = vmatprep.subr.mxu0 0.0
    %115 = vmatpush2.msra.mxu0 0.0
    %116 = vmatprep.subr.mxu0 0.0
    %117 = vmatpush2.msra.mxu0 0.0
    %118 = vmatprep.mubr.f32.mxu0 0.0
    %119 = vmatmul.mubr.f32.gmra.mxu0 %v49
    %v120 = vpop.f32.mrf.mxu0
    %v121 = vadd.f32 %v45, %v120
    %v122 = vpop.f32.mrf.mxu0
    %123 = vmatprep.mubr.f32.mxu0 0.0
    %124 = vmatmul.mubr.f32.gmra.mxu0 %v52
    %v125 = vpop.f32.mrf.mxu0
    %v126 = vadd.f32 %v45, %v125
    %v127 = vpop.f32.mrf.mxu0
    %128 = vdwg.mxu0
    %129 = vst [vmem:[#allocation2] sm:$0xff] %v121
    %130 = vst [vmem:[#allocation2 + $0x8] sm:$0xff] %v126
    %v131 = vld [vmem:[#allocation2] sm:$0x3]
    %vm132 = vcmask 261120
    %v134 = vsel %vm132, 0.0, 0
    %136 = vmatprep.subr.mxu0 0.0
    %137 = vmatpush1.msra.mxu0 0.0
    %138 = vmatprep.subr.mxu0 0.0
    %139 = vmatpush1.msra.mxu0 0.0
    %140 = vmatprep.subr.mxu0 0.0
    %141 = vmatpush1.msra.mxu0 0.0
    %142 = vmatprep.subr.mxu0 0.0
    %143 = vmatpush1.msra.mxu0 0.0
    %144 = vmatprep.subr.mxu0 0.0
    %145 = vmatpush1.msra.mxu0 0.0
    %146 = vmatprep.subr.mxu0 0.0
    %147 = vmatpush1.msra.mxu0 0.0
    %148 = vmatprep.subr.mxu0 0.0
    %149 = vmatpush1.msra.mxu0 0.0
    %150 = vmatprep.subr.mxu0 0.0
    %151 = vmatpush1.msra.mxu0 0.0
    %152 = vmatprep.subr.mxu0 0.0
    %153 = vmatpush1.msra.mxu0 0.0
    %154 = vmatprep.subr.mxu0 0.0
    %155 = vmatpush1.msra.mxu0 0.0
    %156 = vmatprep.subr.mxu0 0.0
    %157 = vmatpush1.msra.mxu0 0.0
    %158 = vmatprep.subr.mxu0 0.0
    %159 = vmatpush1.msra.mxu0 0.0
    %160 = vmatprep.subr.mxu0 0.0
    %161 = vmatpush1.msra.mxu0 %v39
    %162 = vmatprep.subr.mxu0 0.0
    %163 = vmatpush1.msra.mxu0 %v38
    %164 = vmatprep.subr.mxu0 0.0
    %165 = vmatpush1.msra.mxu0 %v37
    %166 = vmatprep.subr.mxu0 0.0
    %167 = vmatpush1.msra.mxu0 %v36
    %168 = vmatprep.subr.mxu0 0.0
    %169 = vmatpush2.msra.mxu0 0.0
    %170 = vmatprep.subr.mxu0 0.0
    %171 = vmatpush2.msra.mxu0 0.0
    %172 = vmatprep.subr.mxu0 0.0
    %173 = vmatpush2.msra.mxu0 0.0
    %174 = vmatprep.subr.mxu0 0.0
    %175 = vmatpush2.msra.mxu0 0.0
    %176 = vmatprep.subr.mxu0 0.0
    %177 = vmatpush2.msra.mxu0 0.0
    %178 = vmatprep.subr.mxu0 0.0
    %179 = vmatpush2.msra.mxu0 0.0
    %180 = vmatprep.subr.mxu0 0.0
    %181 = vmatpush2.msra.mxu0 0.0
    %182 = vmatprep.subr.mxu0 0.0
    %183 = vmatpush2.msra.mxu0 0.0
    %184 = vmatprep.subr.mxu0 0.0
    %185 = vmatpush2.msra.mxu0 0.0
    %186 = vmatprep.subr.mxu0 0.0
    %187 = vmatpush2.msra.mxu0 0.0
    %188 = vmatprep.subr.mxu0 0.0
    %189 = vmatpush2.msra.mxu0 0.0
    %190 = vmatprep.subr.mxu0 0.0
    %191 = vmatpush2.msra.mxu0 0.0
    %192 = vmatprep.subr.mxu0 0.0
    %193 = vmatpush2.msra.mxu0 0.0
    %194 = vmatprep.subr.mxu0 0.0
    %195 = vmatpush2.msra.mxu0 0.0
    %196 = vmatprep.subr.mxu0 0.0
    %197 = vmatpush2.msra.mxu0 0.0
    %198 = vmatprep.subr.mxu0 0.0
    %199 = vmatpush2.msra.mxu0 0.0
    %200 = vmatprep.mubr.f32.mxu0 0.0
    %201 = vmatmul.mubr.f32.gmra.mxu0 %v134
    %v202 = vpop.f32.mrf.mxu0
    %v203 = vadd.f32 0.0, %v202
    %v204 = vpop.f32.mrf.mxu0
    %205 = vdwg.mxu0
    %v206 = vadd.f32 %v131, %v203
    %v207 = vxor.u32 %v206, 2147483648
    %v208 = vmul.f32 %v207, 1.442695
    %v209 = vpow.pop %v208
    %v210 = vadd.f32 %v209, 1.0
    %v211 = vrcp.pop %v210
    %v212 = vmul.f32 1.0, %v211
    %v213 = vmul.f32 %v212, 2.0
    %v214 = vsub.f32 %v213, 1.0
    %v215 = vmul.f32 %v212, 0.0
    %217 = vrot.lane.b32.xlu0 %v214, 64
    %v218 = vpop.permute.xlu0 %217
    %v220 = vmul.f32 %v212, %v218
    %222 = vrot.lane.b32.xlu0 %v220, 32
    %v223 = vpop.permute.xlu0 %222
    %v225 = vadd.f32 %v215, %v223
    %v226 = vtanh.pop %v225
    %228 = vrot.lane.b32.xlu0 %v226, 64
    %v229 = vpop.permute.xlu0 %228
    %v231 = vmul.f32 %v212, %v229
    %233 = vrot.lane.b32.xlu0 %v231, 32
    %v234 = vpop.permute.xlu0 %233
    %vm236 = vcmask 254976
    %237 = vst.msk [vmem:[#allocation3] sm:$0x3] %vm236, %v234
    %v238 = vld [vmem:[#allocation2 + $0x2] sm:$0x3]
    %v239 = vsel %vm132, %v234, 0
    %241 = vmatprep.subr.mxu0 0.0
    %242 = vmatpush1.msra.mxu0 0.0
    %243 = vmatprep.subr.mxu0 0.0
    %244 = vmatpush1.msra.mxu0 0.0
    %245 = vmatprep.subr.mxu0 0.0
    %246 = vmatpush1.msra.mxu0 0.0
    %247 = vmatprep.subr.mxu0 0.0
    %248 = vmatpush1.msra.mxu0 0.0
    %249 = vmatprep.subr.mxu0 0.0
    %250 = vmatpush1.msra.mxu0 0.0
    %251 = vmatprep.subr.mxu0 0.0
    %252 = vmatpush1.msra.mxu0 0.0
    %253 = vmatprep.subr.mxu0 0.0
    %254 = vmatpush1.msra.mxu0 0.0
    %255 = vmatprep.subr.mxu0 0.0
    %256 = vmatpush1.msra.mxu0 0.0
    %257 = vmatprep.subr.mxu0 0.0
    %258 = vmatpush1.msra.mxu0 0.0
    %259 = vmatprep.subr.mxu0 0.0
    %260 = vmatpush1.msra.mxu0 0.0
    %261 = vmatprep.subr.mxu0 0.0
    %262 = vmatpush1.msra.mxu0 0.0
    %263 = vmatprep.subr.mxu0 0.0
    %264 = vmatpush1.msra.mxu0 0.0
    %265 = vmatprep.subr.mxu0 0.0
    %266 = vmatpush1.msra.mxu0 %v39
    %267 = vmatprep.subr.mxu0 0.0
    %268 = vmatpush1.msra.mxu0 %v38
    %269 = vmatprep.subr.mxu0 0.0
    %270 = vmatpush1.msra.mxu0 %v37
    %271 = vmatprep.subr.mxu0 0.0
    %272 = vmatpush1.msra.mxu0 %v36
    %273 = vmatprep.subr.mxu0 0.0
    %274 = vmatpush2.msra.mxu0 0.0
    %275 = vmatprep.subr.mxu0 0.0
    %276 = vmatpush2.msra.mxu0 0.0
    %277 = vmatprep.subr.mxu0 0.0
    %278 = vmatpush2.msra.mxu0 0.0
    %279 = vmatprep.subr.mxu0 0.0
    %280 = vmatpush2.msra.mxu0 0.0
    %281 = vmatprep.subr.mxu0 0.0
    %282 = vmatpush2.msra.mxu0 0.0
    %283 = vmatprep.subr.mxu0 0.0
    %284 = vmatpush2.msra.mxu0 0.0
    %285 = vmatprep.subr.mxu0 0.0
    %286 = vmatpush2.msra.mxu0 0.0
    %287 = vmatprep.subr.mxu0 0.0
    %288 = vmatpush2.msra.mxu0 0.0
    %289 = vmatprep.subr.mxu0 0.0
    %290 = vmatpush2.msra.mxu0 0.0
    %291 = vmatprep.subr.mxu0 0.0
    %292 = vmatpush2.msra.mxu0 0.0
    %293 = vmatprep.subr.mxu0 0.0
    %294 = vmatpush2.msra.mxu0 0.0
    %295 = vmatprep.subr.mxu0 0.0
    %296 = vmatpush2.msra.mxu0 0.0
    %297 = vmatprep.subr.mxu0 0.0
    %298 = vmatpush2.msra.mxu0 0.0
    %299 = vmatprep.subr.mxu0 0.0
    %300 = vmatpush2.msra.mxu0 0.0
    %301 = vmatprep.subr.mxu0 0.0
    %302 = vmatpush2.msra.mxu0 0.0
    %303 = vmatprep.subr.mxu0 0.0
    %304 = vmatpush2.msra.mxu0 0.0
    %305 = vmatprep.mubr.f32.mxu0 0.0
    %306 = vmatmul.mubr.f32.gmra.mxu0 %v239
    %v307 = vpop.f32.mrf.mxu0
    %v308 = vadd.f32 0.0, %v307
    %v309 = vpop.f32.mrf.mxu0
    %310 = vdwg.mxu0
    %v311 = vadd.f32 %v238, %v308
    %v312 = vxor.u32 %v311, 2147483648
    %v313 = vmul.f32 %v312, 1.442695
    %v314 = vpow.pop %v313
    %v315 = vadd.f32 %v314, 1.0
    %v316 = vrcp.pop %v315
    %v317 = vmul.f32 1.0, %v316
    %v318 = vmul.f32 %v317, 2.0
    %v319 = vsub.f32 %v318, 1.0
    %v320 = vmul.f32 %v317, %v225
    %322 = vrot.lane.b32.xlu0 %v319, 64
    %v323 = vpop.permute.xlu0 %322
    %v325 = vmul.f32 %v317, %v323
    %327 = vrot.lane.b32.xlu0 %v325, 32
    %v328 = vpop.permute.xlu0 %327
    %v330 = vadd.f32 %v320, %v328
    %v331 = vtanh.pop %v330
    %333 = vrot.lane.b32.xlu0 %v331, 64
    %v334 = vpop.permute.xlu0 %333
    %v336 = vmul.f32 %v317, %v334
    %338 = vrot.lane.b32.xlu0 %v336, 32
    %v339 = vpop.permute.xlu0 %338
    %341 = vst.msk [vmem:[#allocation3 + $0x2] sm:$0x3] %vm236, %v339
    %v342 = vld [vmem:[#allocation2 + $0x4] sm:$0x3]
    %v343 = vsel %vm132, %v339, 0
    %345 = vmatprep.subr.mxu0 0.0
    %346 = vmatpush1.msra.mxu0 0.0
    %347 = vmatprep.subr.mxu0 0.0
    %348 = vmatpush1.msra.mxu0 0.0
    %349 = vmatprep.subr.mxu0 0.0
    %350 = vmatpush1.msra.mxu0 0.0
    %351 = vmatprep.subr.mxu0 0.0
    %352 = vmatpush1.msra.mxu0 0.0
    %353 = vmatprep.subr.mxu0 0.0
    %354 = vmatpush1.msra.mxu0 0.0
    %355 = vmatprep.subr.mxu0 0.0
    %356 = vmatpush1.msra.mxu0 0.0
    %357 = vmatprep.subr.mxu0 0.0
    %358 = vmatpush1.msra.mxu0 0.0
    %359 = vmatprep.subr.mxu0 0.0
    %360 = vmatpush1.msra.mxu0 0.0
    %361 = vmatprep.subr.mxu0 0.0
    %362 = vmatpush1.msra.mxu0 0.0
    %363 = vmatprep.subr.mxu0 0.0
    %364 = vmatpush1.msra.mxu0 0.0
    %365 = vmatprep.subr.mxu0 0.0
    %366 = vmatpush1.msra.mxu0 0.0
    %367 = vmatprep.subr.mxu0 0.0
    %368 = vmatpush1.msra.mxu0 0.0
    %369 = vmatprep.subr.mxu0 0.0
    %370 = vmatpush1.msra.mxu0 %v39
    %371 = vmatprep.subr.mxu0 0.0
    %372 = vmatpush1.msra.mxu0 %v38
    %373 = vmatprep.subr.mxu0 0.0
    %374 = vmatpush1.msra.mxu0 %v37
    %375 = vmatprep.subr.mxu0 0.0
    %376 = vmatpush1.msra.mxu0 %v36
    %377 = vmatprep.subr.mxu0 0.0
    %378 = vmatpush2.msra.mxu0 0.0
    %379 = vmatprep.subr.mxu0 0.0
    %380 = vmatpush2.msra.mxu0 0.0
    %381 = vmatprep.subr.mxu0 0.0
    %382 = vmatpush2.msra.mxu0 0.0
    %383 = vmatprep.subr.mxu0 0.0
    %384 = vmatpush2.msra.mxu0 0.0
    %385 = vmatprep.subr.mxu0 0.0
    %386 = vmatpush2.msra.mxu0 0.0
    %387 = vmatprep.subr.mxu0 0.0
    %388 = vmatpush2.msra.mxu0 0.0
    %389 = vmatprep.subr.mxu0 0.0
    %390 = vmatpush2.msra.mxu0 0.0
    %391 = vmatprep.subr.mxu0 0.0
    %392 = vmatpush2.msra.mxu0 0.0
    %393 = vmatprep.subr.mxu0 0.0
    %394 = vmatpush2.msra.mxu0 0.0
    %395 = vmatprep.subr.mxu0 0.0
    %396 = vmatpush2.msra.mxu0 0.0
    %397 = vmatprep.subr.mxu0 0.0
    %398 = vmatpush2.msra.mxu0 0.0
    %399 = vmatprep.subr.mxu0 0.0
    %400 = vmatpush2.msra.mxu0 0.0
    %401 = vmatprep.subr.mxu0 0.0
    %402 = vmatpush2.msra.mxu0 0.0
    %403 = vmatprep.subr.mxu0 0.0
    %404 = vmatpush2.msra.mxu0 0.0
    %405 = vmatprep.subr.mxu0 0.0
    %406 = vmatpush2.msra.mxu0 0.0
    %407 = vmatprep.subr.mxu0 0.0
    %408 = vmatpush2.msra.mxu0 0.0
    %409 = vmatprep.mubr.f32.mxu0 0.0
    %410 = vmatmul.mubr.f32.gmra.mxu0 %v343
    %v411 = vpop.f32.mrf.mxu0
    %v412 = vadd.f32 0.0, %v411
    %v413 = vpop.f32.mrf.mxu0
    %414 = vdwg.mxu0
    %v415 = vadd.f32 %v342, %v412
    %v416 = vxor.u32 %v415, 2147483648
    %v417 = vmul.f32 %v416, 1.442695
    %v418 = vpow.pop %v417
    %v419 = vadd.f32 %v418, 1.0
    %v420 = vrcp.pop %v419
    %v421 = vmul.f32 1.0, %v420
    %v422 = vmul.f32 %v421, 2.0
    %v423 = vsub.f32 %v422, 1.0
    %v424 = vmul.f32 %v421, %v330
    %426 = vrot.lane.b32.xlu0 %v423, 64
    %v427 = vpop.permute.xlu0 %426
    %v429 = vmul.f32 %v421, %v427
    %431 = vrot.lane.b32.xlu0 %v429, 32
    %v432 = vpop.permute.xlu0 %431
    %v434 = vadd.f32 %v424, %v432
    %v435 = vtanh.pop %v434
    %437 = vrot.lane.b32.xlu0 %v435, 64
    %v438 = vpop.permute.xlu0 %437
    %v440 = vmul.f32 %v421, %v438
    %442 = vrot.lane.b32.xlu0 %v440, 32
    %v443 = vpop.permute.xlu0 %442
    %445 = vst.msk [vmem:[#allocation3 + $0x4] sm:$0x3] %vm236, %v443
    %v446 = vld [vmem:[#allocation2 + $0x6] sm:$0x3]
    %v447 = vsel %vm132, %v443, 0
    %449 = vmatprep.subr.mxu0 0.0
    %450 = vmatpush1.msra.mxu0 0.0
    %451 = vmatprep.subr.mxu0 0.0
    %452 = vmatpush1.msra.mxu0 0.0
    %453 = vmatprep.subr.mxu0 0.0
    %454 = vmatpush1.msra.mxu0 0.0
    %455 = vmatprep.subr.mxu0 0.0
    %456 = vmatpush1.msra.mxu0 0.0
    %457 = vmatprep.subr.mxu0 0.0
    %458 = vmatpush1.msra.mxu0 0.0
    %459 = vmatprep.subr.mxu0 0.0
    %460 = vmatpush1.msra.mxu0 0.0
    %461 = vmatprep.subr.mxu0 0.0
    %462 = vmatpush1.msra.mxu0 0.0
    %463 = vmatprep.subr.mxu0 0.0
    %464 = vmatpush1.msra.mxu0 0.0
    %465 = vmatprep.subr.mxu0 0.0
    %466 = vmatpush1.msra.mxu0 0.0
    %467 = vmatprep.subr.mxu0 0.0
    %468 = vmatpush1.msra.mxu0 0.0
    %469 = vmatprep.subr.mxu0 0.0
    %470 = vmatpush1.msra.mxu0 0.0
    %471 = vmatprep.subr.mxu0 0.0
    %472 = vmatpush1.msra.mxu0 0.0
    %473 = vmatprep.subr.mxu0 0.0
    %474 = vmatpush1.msra.mxu0 %v39
    %475 = vmatprep.subr.mxu0 0.0
    %476 = vmatpush1.msra.mxu0 %v38
    %477 = vmatprep.subr.mxu0 0.0
    %478 = vmatpush1.msra.mxu0 %v37
    %479 = vmatprep.subr.mxu0 0.0
    %480 = vmatpush1.msra.mxu0 %v36
    %481 = vmatprep.subr.mxu0 0.0
    %482 = vmatpush2.msra.mxu0 0.0
    %483 = vmatprep.subr.mxu0 0.0
    %484 = vmatpush2.msra.mxu0 0.0
    %485 = vmatprep.subr.mxu0 0.0
    %486 = vmatpush2.msra.mxu0 0.0
    %487 = vmatprep.subr.mxu0 0.0
    %488 = vmatpush2.msra.mxu0 0.0
    %489 = vmatprep.subr.mxu0 0.0
    %490 = vmatpush2.msra.mxu0 0.0
    %491 = vmatprep.subr.mxu0 0.0
    %492 = vmatpush2.msra.mxu0 0.0
    %493 = vmatprep.subr.mxu0 0.0
    %494 = vmatpush2.msra.mxu0 0.0
    %495 = vmatprep.subr.mxu0 0.0
    %496 = vmatpush2.msra.mxu0 0.0
    %497 = vmatprep.subr.mxu0 0.0
    %498 = vmatpush2.msra.mxu0 0.0
    %499 = vmatprep.subr.mxu0 0.0
    %500 = vmatpush2.msra.mxu0 0.0
    %501 = vmatprep.subr.mxu0 0.0
    %502 = vmatpush2.msra.mxu0 0.0
    %503 = vmatprep.subr.mxu0 0.0
    %504 = vmatpush2.msra.mxu0 0.0
    %505 = vmatprep.subr.mxu0 0.0
    %506 = vmatpush2.msra.mxu0 0.0
    %507 = vmatprep.subr.mxu0 0.0
    %508 = vmatpush2.msra.mxu0 0.0
    %509 = vmatprep.subr.mxu0 0.0
    %510 = vmatpush2.msra.mxu0 0.0
    %511 = vmatprep.subr.mxu0 0.0
    %512 = vmatpush2.msra.mxu0 0.0
    %513 = vmatprep.mubr.f32.mxu0 0.0
    %514 = vmatmul.mubr.f32.gmra.mxu0 %v447
    %v515 = vpop.f32.mrf.mxu0
    %v516 = vadd.f32 0.0, %v515
    %v517 = vpop.f32.mrf.mxu0
    %518 = vdwg.mxu0
    %v519 = vadd.f32 %v446, %v516
    %v520 = vxor.u32 %v519, 2147483648
    %v521 = vmul.f32 %v520, 1.442695
    %v522 = vpow.pop %v521
    %v523 = vadd.f32 %v522, 1.0
    %v524 = vrcp.pop %v523
    %v525 = vmul.f32 1.0, %v524
    %v526 = vmul.f32 %v525, 2.0
    %v527 = vsub.f32 %v526, 1.0
    %v528 = vmul.f32 %v525, %v434
    %530 = vrot.lane.b32.xlu0 %v527, 64
    %v531 = vpop.permute.xlu0 %530
    %v533 = vmul.f32 %v525, %v531
    %535 = vrot.lane.b32.xlu0 %v533, 32
    %v536 = vpop.permute.xlu0 %535
    %v538 = vadd.f32 %v528, %v536
    %v539 = vtanh.pop %v538
    %541 = vrot.lane.b32.xlu0 %v539, 64
    %v542 = vpop.permute.xlu0 %541
    %v544 = vmul.f32 %v525, %v542
    %546 = vrot.lane.b32.xlu0 %v544, 32
    %v547 = vpop.permute.xlu0 %546
    %549 = vst.msk [vmem:[#allocation3 + $0x6] sm:$0x3] %vm236, %v547
    %v550 = vld [vmem:[#allocation2 + $0x8] sm:$0x3]
    %v551 = vsel %vm132, %v547, 0
    %553 = vmatprep.subr.mxu0 0.0
    %554 = vmatpush1.msra.mxu0 0.0
    %555 = vmatprep.subr.mxu0 0.0
    %556 = vmatpush1.msra.mxu0 0.0
    %557 = vmatprep.subr.mxu0 0.0
    %558 = vmatpush1.msra.mxu0 0.0
    %559 = vmatprep.subr.mxu0 0.0
    %560 = vmatpush1.msra.mxu0 0.0
    %561 = vmatprep.subr.mxu0 0.0
    %562 = vmatpush1.msra.mxu0 0.0
    %563 = vmatprep.subr.mxu0 0.0
    %564 = vmatpush1.msra.mxu0 0.0
    %565 = vmatprep.subr.mxu0 0.0
    %566 = vmatpush1.msra.mxu0 0.0
    %567 = vmatprep.subr.mxu0 0.0
    %568 = vmatpush1.msra.mxu0 0.0
    %569 = vmatprep.subr.mxu0 0.0
    %570 = vmatpush1.msra.mxu0 0.0
    %571 = vmatprep.subr.mxu0 0.0
    %572 = vmatpush1.msra.mxu0 0.0
    %573 = vmatprep.subr.mxu0 0.0
    %574 = vmatpush1.msra.mxu0 0.0
    %575 = vmatprep.subr.mxu0 0.0
    %576 = vmatpush1.msra.mxu0 0.0
    %577 = vmatprep.subr.mxu0 0.0
    %578 = vmatpush1.msra.mxu0 %v39
    %579 = vmatprep.subr.mxu0 0.0
    %580 = vmatpush1.msra.mxu0 %v38
    %581 = vmatprep.subr.mxu0 0.0
    %582 = vmatpush1.msra.mxu0 %v37
    %583 = vmatprep.subr.mxu0 0.0
    %584 = vmatpush1.msra.mxu0 %v36
    %585 = vmatprep.subr.mxu0 0.0
    %586 = vmatpush2.msra.mxu0 0.0
    %587 = vmatprep.subr.mxu0 0.0
    %588 = vmatpush2.msra.mxu0 0.0
    %589 = vmatprep.subr.mxu0 0.0
    %590 = vmatpush2.msra.mxu0 0.0
    %591 = vmatprep.subr.mxu0 0.0
    %592 = vmatpush2.msra.mxu0 0.0
    %593 = vmatprep.subr.mxu0 0.0
    %594 = vmatpush2.msra.mxu0 0.0
    %595 = vmatprep.subr.mxu0 0.0
    %596 = vmatpush2.msra.mxu0 0.0
    %597 = vmatprep.subr.mxu0 0.0
    %598 = vmatpush2.msra.mxu0 0.0
    %599 = vmatprep.subr.mxu0 0.0
    %600 = vmatpush2.msra.mxu0 0.0
    %601 = vmatprep.subr.mxu0 0.0
    %602 = vmatpush2.msra.mxu0 0.0
    %603 = vmatprep.subr.mxu0 0.0
    %604 = vmatpush2.msra.mxu0 0.0
    %605 = vmatprep.subr.mxu0 0.0
    %606 = vmatpush2.msra.mxu0 0.0
    %607 = vmatprep.subr.mxu0 0.0
    %608 = vmatpush2.msra.mxu0 0.0
    %609 = vmatprep.subr.mxu0 0.0
    %610 = vmatpush2.msra.mxu0 0.0
    %611 = vmatprep.subr.mxu0 0.0
    %612 = vmatpush2.msra.mxu0 0.0
    %613 = vmatprep.subr.mxu0 0.0
    %614 = vmatpush2.msra.mxu0 0.0
    %615 = vmatprep.subr.mxu0 0.0
    %616 = vmatpush2.msra.mxu0 0.0
    %617 = vmatprep.mubr.f32.mxu0 0.0
    %618 = vmatmul.mubr.f32.gmra.mxu0 %v551
    %v619 = vpop.f32.mrf.mxu0
    %v620 = vadd.f32 0.0, %v619
    %v621 = vpop.f32.mrf.mxu0
    %622 = vdwg.mxu0
    %v623 = vadd.f32 %v550, %v620
    %v624 = vxor.u32 %v623, 2147483648
    %v625 = vmul.f32 %v624, 1.442695
    %v626 = vpow.pop %v625
    %v627 = vadd.f32 %v626, 1.0
    %v628 = vrcp.pop %v627
    %v629 = vmul.f32 1.0, %v628
    %v630 = vmul.f32 %v629, 2.0
    %v631 = vsub.f32 %v630, 1.0
    %v632 = vmul.f32 %v629, %v538
    %634 = vrot.lane.b32.xlu0 %v631, 64
    %v635 = vpop.permute.xlu0 %634
    %v637 = vmul.f32 %v629, %v635
    %639 = vrot.lane.b32.xlu0 %v637, 32
    %v640 = vpop.permute.xlu0 %639
    %v642 = vadd.f32 %v632, %v640
    %v643 = vtanh.pop %v642
    %645 = vrot.lane.b32.xlu0 %v643, 64
    %v646 = vpop.permute.xlu0 %645
    %v648 = vmul.f32 %v629, %v646
    %650 = vrot.lane.b32.xlu0 %v648, 32
    %v651 = vpop.permute.xlu0 %650
    %653 = vst.msk [vmem:[#allocation3 + $0x8] sm:$0x3] %vm236, %v651
    %v654 = vld [vmem:[#allocation2 + $0xa] sm:$0x3]
    %v655 = vsel %vm132, %v651, 0
    %657 = vmatprep.subr.mxu0 0.0
    %658 = vmatpush1.msra.mxu0 0.0
    %659 = vmatprep.subr.mxu0 0.0
    %660 = vmatpush1.msra.mxu0 0.0
    %661 = vmatprep.subr.mxu0 0.0
    %662 = vmatpush1.msra.mxu0 0.0
    %663 = vmatprep.subr.mxu0 0.0
    %664 = vmatpush1.msra.mxu0 0.0
    %665 = vmatprep.subr.mxu0 0.0
    %666 = vmatpush1.msra.mxu0 0.0
    %667 = vmatprep.subr.mxu0 0.0
    %668 = vmatpush1.msra.mxu0 0.0
    %669 = vmatprep.subr.mxu0 0.0
    %670 = vmatpush1.msra.mxu0 0.0
    %671 = vmatprep.subr.mxu0 0.0
    %672 = vmatpush1.msra.mxu0 0.0
    %673 = vmatprep.subr.mxu0 0.0
    %674 = vmatpush1.msra.mxu0 0.0
    %675 = vmatprep.subr.mxu0 0.0
    %676 = vmatpush1.msra.mxu0 0.0
    %677 = vmatprep.subr.mxu0 0.0
    %678 = vmatpush1.msra.mxu0 0.0
    %679 = vmatprep.subr.mxu0 0.0
    %680 = vmatpush1.msra.mxu0 0.0
    %681 = vmatprep.subr.mxu0 0.0
    %682 = vmatpush1.msra.mxu0 %v39
    %683 = vmatprep.subr.mxu0 0.0
    %684 = vmatpush1.msra.mxu0 %v38
    %685 = vmatprep.subr.mxu0 0.0
    %686 = vmatpush1.msra.mxu0 %v37
    %687 = vmatprep.subr.mxu0 0.0
    %688 = vmatpush1.msra.mxu0 %v36
    %689 = vmatprep.subr.mxu0 0.0
    %690 = vmatpush2.msra.mxu0 0.0
    %691 = vmatprep.subr.mxu0 0.0
    %692 = vmatpush2.msra.mxu0 0.0
    %693 = vmatprep.subr.mxu0 0.0
    %694 = vmatpush2.msra.mxu0 0.0
    %695 = vmatprep.subr.mxu0 0.0
    %696 = vmatpush2.msra.mxu0 0.0
    %697 = vmatprep.subr.mxu0 0.0
    %698 = vmatpush2.msra.mxu0 0.0
    %699 = vmatprep.subr.mxu0 0.0
    %700 = vmatpush2.msra.mxu0 0.0
    %701 = vmatprep.subr.mxu0 0.0
    %702 = vmatpush2.msra.mxu0 0.0
    %703 = vmatprep.subr.mxu0 0.0
    %704 = vmatpush2.msra.mxu0 0.0
    %705 = vmatprep.subr.mxu0 0.0
    %706 = vmatpush2.msra.mxu0 0.0
    %707 = vmatprep.subr.mxu0 0.0
    %708 = vmatpush2.msra.mxu0 0.0
    %709 = vmatprep.subr.mxu0 0.0
    %710 = vmatpush2.msra.mxu0 0.0
    %711 = vmatprep.subr.mxu0 0.0
    %712 = vmatpush2.msra.mxu0 0.0
    %713 = vmatprep.subr.mxu0 0.0
    %714 = vmatpush2.msra.mxu0 0.0
    %715 = vmatprep.subr.mxu0 0.0
    %716 = vmatpush2.msra.mxu0 0.0
    %717 = vmatprep.subr.mxu0 0.0
    %718 = vmatpush2.msra.mxu0 0.0
    %719 = vmatprep.subr.mxu0 0.0
    %720 = vmatpush2.msra.mxu0 0.0
    %721 = vmatprep.mubr.f32.mxu0 0.0
    %722 = vmatmul.mubr.f32.gmra.mxu0 %v655
    %v723 = vpop.f32.mrf.mxu0
    %v724 = vadd.f32 0.0, %v723
    %v725 = vpop.f32.mrf.mxu0
    %726 = vdwg.mxu0
    %v727 = vadd.f32 %v654, %v724
    %v728 = vxor.u32 %v727, 2147483648
    %v729 = vmul.f32 %v728, 1.442695
    %v730 = vpow.pop %v729
    %v731 = vadd.f32 %v730, 1.0
    %v732 = vrcp.pop %v731
    %v733 = vmul.f32 1.0, %v732
    %v734 = vmul.f32 %v733, 2.0
    %v735 = vsub.f32 %v734, 1.0
    %v736 = vmul.f32 %v733, %v642
    %738 = vrot.lane.b32.xlu0 %v735, 64
    %v739 = vpop.permute.xlu0 %738
    %v741 = vmul.f32 %v733, %v739
    %743 = vrot.lane.b32.xlu0 %v741, 32
    %v744 = vpop.permute.xlu0 %743
    %v746 = vadd.f32 %v736, %v744
    %v747 = vtanh.pop %v746
    %749 = vrot.lane.b32.xlu0 %v747, 64
    %v750 = vpop.permute.xlu0 %749
    %v752 = vmul.f32 %v733, %v750
    %754 = vrot.lane.b32.xlu0 %v752, 32
    %v755 = vpop.permute.xlu0 %754
    %757 = vst.msk [vmem:[#allocation3 + $0xa] sm:$0x3] %vm236, %v755
    %v758 = vld [vmem:[#allocation2 + $0xc] sm:$0x3]
    %v759 = vsel %vm132, %v755, 0
    %761 = vmatprep.subr.mxu0 0.0
    %762 = vmatpush1.msra.mxu0 0.0
    %763 = vmatprep.subr.mxu0 0.0
    %764 = vmatpush1.msra.mxu0 0.0
    %765 = vmatprep.subr.mxu0 0.0
    %766 = vmatpush1.msra.mxu0 0.0
    %767 = vmatprep.subr.mxu0 0.0
    %768 = vmatpush1.msra.mxu0 0.0
    %769 = vmatprep.subr.mxu0 0.0
    %770 = vmatpush1.msra.mxu0 0.0
    %771 = vmatprep.subr.mxu0 0.0
    %772 = vmatpush1.msra.mxu0 0.0
    %773 = vmatprep.subr.mxu0 0.0
    %774 = vmatpush1.msra.mxu0 0.0
    %775 = vmatprep.subr.mxu0 0.0
    %776 = vmatpush1.msra.mxu0 0.0
    %777 = vmatprep.subr.mxu0 0.0
    %778 = vmatpush1.msra.mxu0 0.0
    %779 = vmatprep.subr.mxu0 0.0
    %780 = vmatpush1.msra.mxu0 0.0
    %781 = vmatprep.subr.mxu0 0.0
    %782 = vmatpush1.msra.mxu0 0.0
    %783 = vmatprep.subr.mxu0 0.0
    %784 = vmatpush1.msra.mxu0 0.0
    %785 = vmatprep.subr.mxu0 0.0
    %786 = vmatpush1.msra.mxu0 %v39
    %787 = vmatprep.subr.mxu0 0.0
    %788 = vmatpush1.msra.mxu0 %v38
    %789 = vmatprep.subr.mxu0 0.0
    %790 = vmatpush1.msra.mxu0 %v37
    %791 = vmatprep.subr.mxu0 0.0
    %792 = vmatpush1.msra.mxu0 %v36
    %793 = vmatprep.subr.mxu0 0.0
    %794 = vmatpush2.msra.mxu0 0.0
    %795 = vmatprep.subr.mxu0 0.0
    %796 = vmatpush2.msra.mxu0 0.0
    %797 = vmatprep.subr.mxu0 0.0
    %798 = vmatpush2.msra.mxu0 0.0
    %799 = vmatprep.subr.mxu0 0.0
    %800 = vmatpush2.msra.mxu0 0.0
    %801 = vmatprep.subr.mxu0 0.0
    %802 = vmatpush2.msra.mxu0 0.0
    %803 = vmatprep.subr.mxu0 0.0
    %804 = vmatpush2.msra.mxu0 0.0
    %805 = vmatprep.subr.mxu0 0.0
    %806 = vmatpush2.msra.mxu0 0.0
    %807 = vmatprep.subr.mxu0 0.0
    %808 = vmatpush2.msra.mxu0 0.0
    %809 = vmatprep.subr.mxu0 0.0
    %810 = vmatpush2.msra.mxu0 0.0
    %811 = vmatprep.subr.mxu0 0.0
    %812 = vmatpush2.msra.mxu0 0.0
    %813 = vmatprep.subr.mxu0 0.0
    %814 = vmatpush2.msra.mxu0 0.0
    %815 = vmatprep.subr.mxu0 0.0
    %816 = vmatpush2.msra.mxu0 0.0
    %817 = vmatprep.subr.mxu0 0.0
    %818 = vmatpush2.msra.mxu0 0.0
    %819 = vmatprep.subr.mxu0 0.0
    %820 = vmatpush2.msra.mxu0 0.0
    %821 = vmatprep.subr.mxu0 0.0
    %822 = vmatpush2.msra.mxu0 0.0
    %823 = vmatprep.subr.mxu0 0.0
    %824 = vmatpush2.msra.mxu0 0.0
    %825 = vmatprep.mubr.f32.mxu0 0.0
    %826 = vmatmul.mubr.f32.gmra.mxu0 %v759
    %v827 = vpop.f32.mrf.mxu0
    %v828 = vadd.f32 0.0, %v827
    %v829 = vpop.f32.mrf.mxu0
    %830 = vdwg.mxu0
    %v831 = vadd.f32 %v758, %v828
    %v832 = vxor.u32 %v831, 2147483648
    %v833 = vmul.f32 %v832, 1.442695
    %v834 = vpow.pop %v833
    %v835 = vadd.f32 %v834, 1.0
    %v836 = vrcp.pop %v835
    %v837 = vmul.f32 1.0, %v836
    %v838 = vmul.f32 %v837, 2.0
    %v839 = vsub.f32 %v838, 1.0
    %v840 = vmul.f32 %v837, %v746
    %842 = vrot.lane.b32.xlu0 %v839, 64
    %v843 = vpop.permute.xlu0 %842
    %v845 = vmul.f32 %v837, %v843
    %847 = vrot.lane.b32.xlu0 %v845, 32
    %v848 = vpop.permute.xlu0 %847
    %v850 = vadd.f32 %v840, %v848
    %v851 = vtanh.pop %v850
    %853 = vrot.lane.b32.xlu0 %v851, 64
    %v854 = vpop.permute.xlu0 %853
    %v856 = vmul.f32 %v837, %v854
    %858 = vrot.lane.b32.xlu0 %v856, 32
    %v859 = vpop.permute.xlu0 %858
    %861 = vst.msk [vmem:[#allocation3 + $0xc] sm:$0x3] %vm236, %v859
    %v862 = vld [vmem:[#allocation2 + $0xe] sm:$0x3]
    %v863 = vsel %vm132, %v859, 0
    %865 = vmatprep.subr.mxu0 0.0
    %866 = vmatpush1.msra.mxu0 0.0
    %867 = vmatprep.subr.mxu0 0.0
    %868 = vmatpush1.msra.mxu0 0.0
    %869 = vmatprep.subr.mxu0 0.0
    %870 = vmatpush1.msra.mxu0 0.0
    %871 = vmatprep.subr.mxu0 0.0
    %872 = vmatpush1.msra.mxu0 0.0
    %873 = vmatprep.subr.mxu0 0.0
    %874 = vmatpush1.msra.mxu0 0.0
    %875 = vmatprep.subr.mxu0 0.0
    %876 = vmatpush1.msra.mxu0 0.0
    %877 = vmatprep.subr.mxu0 0.0
    %878 = vmatpush1.msra.mxu0 0.0
    %879 = vmatprep.subr.mxu0 0.0
    %880 = vmatpush1.msra.mxu0 0.0
    %881 = vmatprep.subr.mxu0 0.0
    %882 = vmatpush1.msra.mxu0 0.0
    %883 = vmatprep.subr.mxu0 0.0
    %884 = vmatpush1.msra.mxu0 0.0
    %885 = vmatprep.subr.mxu0 0.0
    %886 = vmatpush1.msra.mxu0 0.0
    %887 = vmatprep.subr.mxu0 0.0
    %888 = vmatpush1.msra.mxu0 0.0
    %889 = vmatprep.subr.mxu0 0.0
    %890 = vmatpush1.msra.mxu0 %v39
    %891 = vmatprep.subr.mxu0 0.0
    %892 = vmatpush1.msra.mxu0 %v38
    %893 = vmatprep.subr.mxu0 0.0
    %894 = vmatpush1.msra.mxu0 %v37
    %895 = vmatprep.subr.mxu0 0.0
    %896 = vmatpush1.msra.mxu0 %v36
    %897 = vmatprep.subr.mxu0 0.0
    %898 = vmatpush2.msra.mxu0 0.0
    %899 = vmatprep.subr.mxu0 0.0
    %900 = vmatpush2.msra.mxu0 0.0
    %901 = vmatprep.subr.mxu0 0.0
    %902 = vmatpush2.msra.mxu0 0.0
    %903 = vmatprep.subr.mxu0 0.0
    %904 = vmatpush2.msra.mxu0 0.0
    %905 = vmatprep.subr.mxu0 0.0
    %906 = vmatpush2.msra.mxu0 0.0
    %907 = vmatprep.subr.mxu0 0.0
    %908 = vmatpush2.msra.mxu0 0.0
    %909 = vmatprep.subr.mxu0 0.0
    %910 = vmatpush2.msra.mxu0 0.0
    %911 = vmatprep.subr.mxu0 0.0
    %912 = vmatpush2.msra.mxu0 0.0
    %913 = vmatprep.subr.mxu0 0.0
    %914 = vmatpush2.msra.mxu0 0.0
    %915 = vmatprep.subr.mxu0 0.0
    %916 = vmatpush2.msra.mxu0 0.0
    %917 = vmatprep.subr.mxu0 0.0
    %918 = vmatpush2.msra.mxu0 0.0
    %919 = vmatprep.subr.mxu0 0.0
    %920 = vmatpush2.msra.mxu0 0.0
    %921 = vmatprep.subr.mxu0 0.0
    %922 = vmatpush2.msra.mxu0 0.0
    %923 = vmatprep.subr.mxu0 0.0
    %924 = vmatpush2.msra.mxu0 0.0
    %925 = vmatprep.subr.mxu0 0.0
    %926 = vmatpush2.msra.mxu0 0.0
    %927 = vmatprep.subr.mxu0 0.0
    %928 = vmatpush2.msra.mxu0 0.0
    %929 = vmatprep.mubr.f32.mxu0 0.0
    %930 = vmatmul.mubr.f32.gmra.mxu0 %v863
    %v931 = vpop.f32.mrf.mxu0
    %v932 = vadd.f32 0.0, %v931
    %v933 = vpop.f32.mrf.mxu0
    %934 = vdwg.mxu0
    %v935 = vadd.f32 %v862, %v932
    %v936 = vxor.u32 %v935, 2147483648
    %v937 = vmul.f32 %v936, 1.442695
    %v938 = vpow.pop %v937
    %v939 = vadd.f32 %v938, 1.0
    %v940 = vrcp.pop %v939
    %v941 = vmul.f32 1.0, %v940
    %v942 = vmul.f32 %v941, 2.0
    %v943 = vsub.f32 %v942, 1.0
    %v944 = vmul.f32 %v941, %v850
    %946 = vrot.lane.b32.xlu0 %v943, 64
    %v947 = vpop.permute.xlu0 %946
    %v949 = vmul.f32 %v941, %v947
    %951 = vrot.lane.b32.xlu0 %v949, 32
    %v952 = vpop.permute.xlu0 %951
    %v954 = vadd.f32 %v944, %v952
    %v955 = vtanh.pop %v954
    %957 = vrot.lane.b32.xlu0 %v955, 64
    %v958 = vpop.permute.xlu0 %957
    %v960 = vmul.f32 %v941, %v958
    %962 = vrot.lane.b32.xlu0 %v960, 32
    %v963 = vpop.permute.xlu0 %962
    %965 = vst.msk [vmem:[#allocation3 + $0xe] sm:$0x3] %vm236, %v963
    %v966 = vld [vmem:[#allocation3] sm:$0xff]
    %v967 = vld [vmem:[#allocation3 + $0x8] sm:$0xff]
    %v968 = vld [vmem:[%s4] sm:$0xff]
    %v969 = vld [vmem:[%s4 + $0x8] sm:$0xff]
    %v970 = vld [vmem:[%s4 + $0x10] sm:$0xff]
    %v971 = vld [vmem:[%s4 + $0x18] sm:$0xff]
    %v972 = vld [vmem:[%s5] sm:$0xff]
    %v973 = vld [vmem:[%s5 + $0x8] sm:$0xff]
    %v974 = vld [vmem:[%s5 + $0x10] sm:$0xff]
    %v975 = vld [vmem:[%s5 + $0x18] sm:$0xff]
    %v976 = vld [vmem:[%s6] sm:$0x1]
    %v978 = vlaneseq
    %v979 = vshrl.u32 %v978, 7
    %v980 = vsub.s32 0, %v979
    %v981 = vrot.slane %v976, %v980
    %v984 = vsel %vm132, %v966, 0
    %v987 = vsel %vm132, %v967, 0
    %989 = vmatprep.subr.mxu0 0.0
    %990 = vmatpush1.msra.mxu0 0.0
    %991 = vmatprep.subr.mxu0 0.0
    %992 = vmatpush1.msra.mxu0 0.0
    %993 = vmatprep.subr.mxu0 0.0
    %994 = vmatpush1.msra.mxu0 0.0
    %995 = vmatprep.subr.mxu0 0.0
    %996 = vmatpush1.msra.mxu0 0.0
    %997 = vmatprep.subr.mxu0 0.0
    %998 = vmatpush1.msra.mxu0 0.0
    %999 = vmatprep.subr.mxu0 0.0
    %1000 = vmatpush1.msra.mxu0 0.0
    %1001 = vmatprep.subr.mxu0 0.0
    %1002 = vmatpush1.msra.mxu0 0.0
    %1003 = vmatprep.subr.mxu0 0.0
    %1004 = vmatpush1.msra.mxu0 0.0
    %1005 = vmatprep.subr.mxu0 0.0
    %1006 = vmatpush1.msra.mxu0 0.0
    %1007 = vmatprep.subr.mxu0 0.0
    %1008 = vmatpush1.msra.mxu0 0.0
    %1009 = vmatprep.subr.mxu0 0.0
    %1010 = vmatpush1.msra.mxu0 0.0
    %1011 = vmatprep.subr.mxu0 0.0
    %1012 = vmatpush1.msra.mxu0 0.0
    %1013 = vmatprep.subr.mxu0 0.0
    %1014 = vmatpush1.msra.mxu0 %v971
    %1015 = vmatprep.subr.mxu0 0.0
    %1016 = vmatpush1.msra.mxu0 %v970
    %1017 = vmatprep.subr.mxu0 0.0
    %1018 = vmatpush1.msra.mxu0 %v969
    %1019 = vmatprep.subr.mxu0 0.0
    %1020 = vmatpush1.msra.mxu0 %v968
    %1021 = vmatprep.subr.mxu0 0.0
    %1022 = vmatpush2.msra.mxu0 0.0
    %1023 = vmatprep.subr.mxu0 0.0
    %1024 = vmatpush2.msra.mxu0 0.0
    %1025 = vmatprep.subr.mxu0 0.0
    %1026 = vmatpush2.msra.mxu0 0.0
    %1027 = vmatprep.subr.mxu0 0.0
    %1028 = vmatpush2.msra.mxu0 0.0
    %1029 = vmatprep.subr.mxu0 0.0
    %1030 = vmatpush2.msra.mxu0 0.0
    %1031 = vmatprep.subr.mxu0 0.0
    %1032 = vmatpush2.msra.mxu0 0.0
    %1033 = vmatprep.subr.mxu0 0.0
    %1034 = vmatpush2.msra.mxu0 0.0
    %1035 = vmatprep.subr.mxu0 0.0
    %1036 = vmatpush2.msra.mxu0 0.0
    %1037 = vmatprep.subr.mxu0 0.0
    %1038 = vmatpush2.msra.mxu0 0.0
    %1039 = vmatprep.subr.mxu0 0.0
    %1040 = vmatpush2.msra.mxu0 0.0
    %1041 = vmatprep.subr.mxu0 0.0
    %1042 = vmatpush2.msra.mxu0 0.0
    %1043 = vmatprep.subr.mxu0 0.0
    %1044 = vmatpush2.msra.mxu0 0.0
    %1045 = vmatprep.subr.mxu0 0.0
    %1046 = vmatpush2.msra.mxu0 0.0
    %1047 = vmatprep.subr.mxu0 0.0
    %1048 = vmatpush2.msra.mxu0 0.0
    %1049 = vmatprep.subr.mxu0 0.0
    %1050 = vmatpush2.msra.mxu0 0.0
    %1051 = vmatprep.subr.mxu0 0.0
    %1052 = vmatpush2.msra.mxu0 0.0
    %1053 = vmatprep.mubr.f32.mxu0 0.0
    %1054 = vmatmul.mubr.f32.gmra.mxu0 %v984
    %v1055 = vpop.f32.mrf.mxu0
    %v1056 = vadd.f32 %v981, %v1055
    %v1057 = vpop.f32.mrf.mxu0
    %1058 = vmatprep.mubr.f32.mxu0 0.0
    %1059 = vmatmul.mubr.f32.gmra.mxu0 %v987
    %v1060 = vpop.f32.mrf.mxu0
    %v1061 = vadd.f32 %v981, %v1060
    %v1062 = vpop.f32.mrf.mxu0
    %1063 = vdwg.mxu0
    %1064 = vst [vmem:[#allocation2] sm:$0xff] %v1056
    %1065 = vst [vmem:[#allocation2 + $0x8] sm:$0xff] %v1061
    %v1066 = vld [vmem:[#allocation2] sm:$0x3]
    %1067 = vmatprep.subr.mxu0 0.0
    %1068 = vmatpush1.msra.mxu0 0.0
    %1069 = vmatprep.subr.mxu0 0.0
    %1070 = vmatpush1.msra.mxu0 0.0
    %1071 = vmatprep.subr.mxu0 0.0
    %1072 = vmatpush1.msra.mxu0 0.0
    %1073 = vmatprep.subr.mxu0 0.0
    %1074 = vmatpush1.msra.mxu0 0.0
    %1075 = vmatprep.subr.mxu0 0.0
    %1076 = vmatpush1.msra.mxu0 0.0
    %1077 = vmatprep.subr.mxu0 0.0
    %1078 = vmatpush1.msra.mxu0 0.0
    %1079 = vmatprep.subr.mxu0 0.0
    %1080 = vmatpush1.msra.mxu0 0.0
    %1081 = vmatprep.subr.mxu0 0.0
    %1082 = vmatpush1.msra.mxu0 0.0
    %1083 = vmatprep.subr.mxu0 0.0
    %1084 = vmatpush1.msra.mxu0 0.0
    %1085 = vmatprep.subr.mxu0 0.0
    %1086 = vmatpush1.msra.mxu0 0.0
    %1087 = vmatprep.subr.mxu0 0.0
    %1088 = vmatpush1.msra.mxu0 0.0
    %1089 = vmatprep.subr.mxu0 0.0
    %1090 = vmatpush1.msra.mxu0 0.0
    %1091 = vmatprep.subr.mxu0 0.0
    %1092 = vmatpush1.msra.mxu0 %v975
    %1093 = vmatprep.subr.mxu0 0.0
    %1094 = vmatpush1.msra.mxu0 %v974
    %1095 = vmatprep.subr.mxu0 0.0
    %1096 = vmatpush1.msra.mxu0 %v973
    %1097 = vmatprep.subr.mxu0 0.0
    %1098 = vmatpush1.msra.mxu0 %v972
    %1099 = vmatprep.subr.mxu0 0.0
    %1100 = vmatpush2.msra.mxu0 0.0
    %1101 = vmatprep.subr.mxu0 0.0
    %1102 = vmatpush2.msra.mxu0 0.0
    %1103 = vmatprep.subr.mxu0 0.0
    %1104 = vmatpush2.msra.mxu0 0.0
    %1105 = vmatprep.subr.mxu0 0.0
    %1106 = vmatpush2.msra.mxu0 0.0
    %1107 = vmatprep.subr.mxu0 0.0
    %1108 = vmatpush2.msra.mxu0 0.0
    %1109 = vmatprep.subr.mxu0 0.0
    %1110 = vmatpush2.msra.mxu0 0.0
    %1111 = vmatprep.subr.mxu0 0.0
    %1112 = vmatpush2.msra.mxu0 0.0
    %1113 = vmatprep.subr.mxu0 0.0
    %1114 = vmatpush2.msra.mxu0 0.0
    %1115 = vmatprep.subr.mxu0 0.0
    %1116 = vmatpush2.msra.mxu0 0.0
    %1117 = vmatprep.subr.mxu0 0.0
    %1118 = vmatpush2.msra.mxu0 0.0
    %1119 = vmatprep.subr.mxu0 0.0
    %1120 = vmatpush2.msra.mxu0 0.0
    %1121 = vmatprep.subr.mxu0 0.0
    %1122 = vmatpush2.msra.mxu0 0.0
    %1123 = vmatprep.subr.mxu0 0.0
    %1124 = vmatpush2.msra.mxu0 0.0
    %1125 = vmatprep.subr.mxu0 0.0
    %1126 = vmatpush2.msra.mxu0 0.0
    %1127 = vmatprep.subr.mxu0 0.0
    %1128 = vmatpush2.msra.mxu0 0.0
    %1129 = vmatprep.subr.mxu0 0.0
    %1130 = vmatpush2.msra.mxu0 0.0
    %1131 = vmatprep.mubr.f32.mxu0 0.0
    %1132 = vmatmul.mubr.f32.gmra.mxu0 %v134
    %v1133 = vpop.f32.mrf.mxu0
    %v1134 = vadd.f32 0.0, %v1133
    %v1135 = vpop.f32.mrf.mxu0
    %1136 = vdwg.mxu0
    %v1137 = vadd.f32 %v1066, %v1134
    %v1138 = vxor.u32 %v1137, 2147483648
    %v1139 = vmul.f32 %v1138, 1.442695
    %v1140 = vpow.pop %v1139
    %v1141 = vadd.f32 %v1140, 1.0
    %v1142 = vrcp.pop %v1141
    %v1143 = vmul.f32 1.0, %v1142
    %v1144 = vmul.f32 %v1143, 2.0
    %v1145 = vsub.f32 %v1144, 1.0
    %v1146 = vmul.f32 %v1143, 0.0
    %1148 = vrot.lane.b32.xlu0 %v1145, 64
    %v1149 = vpop.permute.xlu0 %1148
    %v1151 = vmul.f32 %v1143, %v1149
    %1153 = vrot.lane.b32.xlu0 %v1151, 32
    %v1154 = vpop.permute.xlu0 %1153
    %v1156 = vadd.f32 %v1146, %v1154
    %v1157 = vtanh.pop %v1156
    %1159 = vrot.lane.b32.xlu0 %v1157, 64
    %v1160 = vpop.permute.xlu0 %1159
    %v1162 = vmul.f32 %v1143, %v1160
    %v1163 = vld [vmem:[#allocation2 + $0x2] sm:$0x3]
    %1165 = vrot.lane.b32.xlu0 %v1162, 32
    %v1166 = vpop.permute.xlu0 %1165
    %v1167 = vsel %vm132, %v1166, 0
    %1169 = vmatprep.subr.mxu0 0.0
    %1170 = vmatpush1.msra.mxu0 0.0
    %1171 = vmatprep.subr.mxu0 0.0
    %1172 = vmatpush1.msra.mxu0 0.0
    %1173 = vmatprep.subr.mxu0 0.0
    %1174 = vmatpush1.msra.mxu0 0.0
    %1175 = vmatprep.subr.mxu0 0.0
    %1176 = vmatpush1.msra.mxu0 0.0
    %1177 = vmatprep.subr.mxu0 0.0
    %1178 = vmatpush1.msra.mxu0 0.0
    %1179 = vmatprep.subr.mxu0 0.0
    %1180 = vmatpush1.msra.mxu0 0.0
    %1181 = vmatprep.subr.mxu0 0.0
    %1182 = vmatpush1.msra.mxu0 0.0
    %1183 = vmatprep.subr.mxu0 0.0
    %1184 = vmatpush1.msra.mxu0 0.0
    %1185 = vmatprep.subr.mxu0 0.0
    %1186 = vmatpush1.msra.mxu0 0.0
    %1187 = vmatprep.subr.mxu0 0.0
    %1188 = vmatpush1.msra.mxu0 0.0
    %1189 = vmatprep.subr.mxu0 0.0
    %1190 = vmatpush1.msra.mxu0 0.0
    %1191 = vmatprep.subr.mxu0 0.0
    %1192 = vmatpush1.msra.mxu0 0.0
    %1193 = vmatprep.subr.mxu0 0.0
    %1194 = vmatpush1.msra.mxu0 %v975
    %1195 = vmatprep.subr.mxu0 0.0
    %1196 = vmatpush1.msra.mxu0 %v974
    %1197 = vmatprep.subr.mxu0 0.0
    %1198 = vmatpush1.msra.mxu0 %v973
    %1199 = vmatprep.subr.mxu0 0.0
    %1200 = vmatpush1.msra.mxu0 %v972
    %1201 = vmatprep.subr.mxu0 0.0
    %1202 = vmatpush2.msra.mxu0 0.0
    %1203 = vmatprep.subr.mxu0 0.0
    %1204 = vmatpush2.msra.mxu0 0.0
    %1205 = vmatprep.subr.mxu0 0.0
    %1206 = vmatpush2.msra.mxu0 0.0
    %1207 = vmatprep.subr.mxu0 0.0
    %1208 = vmatpush2.msra.mxu0 0.0
    %1209 = vmatprep.subr.mxu0 0.0
    %1210 = vmatpush2.msra.mxu0 0.0
    %1211 = vmatprep.subr.mxu0 0.0
    %1212 = vmatpush2.msra.mxu0 0.0
    %1213 = vmatprep.subr.mxu0 0.0
    %1214 = vmatpush2.msra.mxu0 0.0
    %1215 = vmatprep.subr.mxu0 0.0
    %1216 = vmatpush2.msra.mxu0 0.0
    %1217 = vmatprep.subr.mxu0 0.0
    %1218 = vmatpush2.msra.mxu0 0.0
    %1219 = vmatprep.subr.mxu0 0.0
    %1220 = vmatpush2.msra.mxu0 0.0
    %1221 = vmatprep.subr.mxu0 0.0
    %1222 = vmatpush2.msra.mxu0 0.0
    %1223 = vmatprep.subr.mxu0 0.0
    %1224 = vmatpush2.msra.mxu0 0.0
    %1225 = vmatprep.subr.mxu0 0.0
    %1226 = vmatpush2.msra.mxu0 0.0
    %1227 = vmatprep.subr.mxu0 0.0
    %1228 = vmatpush2.msra.mxu0 0.0
    %1229 = vmatprep.subr.mxu0 0.0
    %1230 = vmatpush2.msra.mxu0 0.0
    %1231 = vmatprep.subr.mxu0 0.0
    %1232 = vmatpush2.msra.mxu0 0.0
    %1233 = vmatprep.mubr.f32.mxu0 0.0
    %1234 = vmatmul.mubr.f32.gmra.mxu0 %v1167
    %v1235 = vpop.f32.mrf.mxu0
    %v1236 = vadd.f32 0.0, %v1235
    %v1237 = vpop.f32.mrf.mxu0
    %1238 = vdwg.mxu0
    %v1239 = vadd.f32 %v1163, %v1236
    %v1240 = vxor.u32 %v1239, 2147483648
    %v1241 = vmul.f32 %v1240, 1.442695
    %v1242 = vpow.pop %v1241
    %v1243 = vadd.f32 %v1242, 1.0
    %v1244 = vrcp.pop %v1243
    %v1245 = vmul.f32 1.0, %v1244
    %v1246 = vmul.f32 %v1245, 2.0
    %v1247 = vsub.f32 %v1246, 1.0
    %v1248 = vmul.f32 %v1245, %v1156
    %1250 = vrot.lane.b32.xlu0 %v1247, 64
    %v1251 = vpop.permute.xlu0 %1250
    %v1253 = vmul.f32 %v1245, %v1251
    %1255 = vrot.lane.b32.xlu0 %v1253, 32
    %v1256 = vpop.permute.xlu0 %1255
    %v1258 = vadd.f32 %v1248, %v1256
    %v1259 = vtanh.pop %v1258
    %1261 = vrot.lane.b32.xlu0 %v1259, 64
    %v1262 = vpop.permute.xlu0 %1261
    %v1264 = vmul.f32 %v1245, %v1262
    %v1265 = vld [vmem:[#allocation2 + $0x4] sm:$0x3]
    %1267 = vrot.lane.b32.xlu0 %v1264, 32
    %v1268 = vpop.permute.xlu0 %1267
    %v1269 = vsel %vm132, %v1268, 0
    %1271 = vmatprep.subr.mxu0 0.0
    %1272 = vmatpush1.msra.mxu0 0.0
    %1273 = vmatprep.subr.mxu0 0.0
    %1274 = vmatpush1.msra.mxu0 0.0
    %1275 = vmatprep.subr.mxu0 0.0
    %1276 = vmatpush1.msra.mxu0 0.0
    %1277 = vmatprep.subr.mxu0 0.0
    %1278 = vmatpush1.msra.mxu0 0.0
    %1279 = vmatprep.subr.mxu0 0.0
    %1280 = vmatpush1.msra.mxu0 0.0
    %1281 = vmatprep.subr.mxu0 0.0
    %1282 = vmatpush1.msra.mxu0 0.0
    %1283 = vmatprep.subr.mxu0 0.0
    %1284 = vmatpush1.msra.mxu0 0.0
    %1285 = vmatprep.subr.mxu0 0.0
    %1286 = vmatpush1.msra.mxu0 0.0
    %1287 = vmatprep.subr.mxu0 0.0
    %1288 = vmatpush1.msra.mxu0 0.0
    %1289 = vmatprep.subr.mxu0 0.0
    %1290 = vmatpush1.msra.mxu0 0.0
    %1291 = vmatprep.subr.mxu0 0.0
    %1292 = vmatpush1.msra.mxu0 0.0
    %1293 = vmatprep.subr.mxu0 0.0
    %1294 = vmatpush1.msra.mxu0 0.0
    %1295 = vmatprep.subr.mxu0 0.0
    %1296 = vmatpush1.msra.mxu0 %v975
    %1297 = vmatprep.subr.mxu0 0.0
    %1298 = vmatpush1.msra.mxu0 %v974
    %1299 = vmatprep.subr.mxu0 0.0
    %1300 = vmatpush1.msra.mxu0 %v973
    %1301 = vmatprep.subr.mxu0 0.0
    %1302 = vmatpush1.msra.mxu0 %v972
    %1303 = vmatprep.subr.mxu0 0.0
    %1304 = vmatpush2.msra.mxu0 0.0
    %1305 = vmatprep.subr.mxu0 0.0
    %1306 = vmatpush2.msra.mxu0 0.0
    %1307 = vmatprep.subr.mxu0 0.0
    %1308 = vmatpush2.msra.mxu0 0.0
    %1309 = vmatprep.subr.mxu0 0.0
    %1310 = vmatpush2.msra.mxu0 0.0
    %1311 = vmatprep.subr.mxu0 0.0
    %1312 = vmatpush2.msra.mxu0 0.0
    %1313 = vmatprep.subr.mxu0 0.0
    %1314 = vmatpush2.msra.mxu0 0.0
    %1315 = vmatprep.subr.mxu0 0.0
    %1316 = vmatpush2.msra.mxu0 0.0
    %1317 = vmatprep.subr.mxu0 0.0
    %1318 = vmatpush2.msra.mxu0 0.0
    %1319 = vmatprep.subr.mxu0 0.0
    %1320 = vmatpush2.msra.mxu0 0.0
    %1321 = vmatprep.subr.mxu0 0.0
    %1322 = vmatpush2.msra.mxu0 0.0
    %1323 = vmatprep.subr.mxu0 0.0
    %1324 = vmatpush2.msra.mxu0 0.0
    %1325 = vmatprep.subr.mxu0 0.0
    %1326 = vmatpush2.msra.mxu0 0.0
    %1327 = vmatprep.subr.mxu0 0.0
    %1328 = vmatpush2.msra.mxu0 0.0
    %1329 = vmatprep.subr.mxu0 0.0
    %1330 = vmatpush2.msra.mxu0 0.0
    %1331 = vmatprep.subr.mxu0 0.0
    %1332 = vmatpush2.msra.mxu0 0.0
    %1333 = vmatprep.subr.mxu0 0.0
    %1334 = vmatpush2.msra.mxu0 0.0
    %1335 = vmatprep.mubr.f32.mxu0 0.0
    %1336 = vmatmul.mubr.f32.gmra.mxu0 %v1269
    %v1337 = vpop.f32.mrf.mxu0
    %v1338 = vadd.f32 0.0, %v1337
    %v1339 = vpop.f32.mrf.mxu0
    %1340 = vdwg.mxu0
    %v1341 = vadd.f32 %v1265, %v1338
    %v1342 = vxor.u32 %v1341, 2147483648
    %v1343 = vmul.f32 %v1342, 1.442695
    %v1344 = vpow.pop %v1343
    %v1345 = vadd.f32 %v1344, 1.0
    %v1346 = vrcp.pop %v1345
    %v1347 = vmul.f32 1.0, %v1346
    %v1348 = vmul.f32 %v1347, 2.0
    %v1349 = vsub.f32 %v1348, 1.0
    %v1350 = vmul.f32 %v1347, %v1258
    %1352 = vrot.lane.b32.xlu0 %v1349, 64
    %v1353 = vpop.permute.xlu0 %1352
    %v1355 = vmul.f32 %v1347, %v1353
    %1357 = vrot.lane.b32.xlu0 %v1355, 32
    %v1358 = vpop.permute.xlu0 %1357
    %v1360 = vadd.f32 %v1350, %v1358
    %v1361 = vtanh.pop %v1360
    %1363 = vrot.lane.b32.xlu0 %v1361, 64
    %v1364 = vpop.permute.xlu0 %1363
    %v1366 = vmul.f32 %v1347, %v1364
    %v1367 = vld [vmem:[#allocation2 + $0x6] sm:$0x3]
    %1369 = vrot.lane.b32.xlu0 %v1366, 32
    %v1370 = vpop.permute.xlu0 %1369
    %v1371 = vsel %vm132, %v1370, 0
    %1373 = vmatprep.subr.mxu0 0.0
    %1374 = vmatpush1.msra.mxu0 0.0
    %1375 = vmatprep.subr.mxu0 0.0
    %1376 = vmatpush1.msra.mxu0 0.0
    %1377 = vmatprep.subr.mxu0 0.0
    %1378 = vmatpush1.msra.mxu0 0.0
    %1379 = vmatprep.subr.mxu0 0.0
    %1380 = vmatpush1.msra.mxu0 0.0
    %1381 = vmatprep.subr.mxu0 0.0
    %1382 = vmatpush1.msra.mxu0 0.0
    %1383 = vmatprep.subr.mxu0 0.0
    %1384 = vmatpush1.msra.mxu0 0.0
    %1385 = vmatprep.subr.mxu0 0.0
    %1386 = vmatpush1.msra.mxu0 0.0
    %1387 = vmatprep.subr.mxu0 0.0
    %1388 = vmatpush1.msra.mxu0 0.0
    %1389 = vmatprep.subr.mxu0 0.0
    %1390 = vmatpush1.msra.mxu0 0.0
    %1391 = vmatprep.subr.mxu0 0.0
    %1392 = vmatpush1.msra.mxu0 0.0
    %1393 = vmatprep.subr.mxu0 0.0
    %1394 = vmatpush1.msra.mxu0 0.0
    %1395 = vmatprep.subr.mxu0 0.0
    %1396 = vmatpush1.msra.mxu0 0.0
    %1397 = vmatprep.subr.mxu0 0.0
    %1398 = vmatpush1.msra.mxu0 %v975
    %1399 = vmatprep.subr.mxu0 0.0
    %1400 = vmatpush1.msra.mxu0 %v974
    %1401 = vmatprep.subr.mxu0 0.0
    %1402 = vmatpush1.msra.mxu0 %v973
    %1403 = vmatprep.subr.mxu0 0.0
    %1404 = vmatpush1.msra.mxu0 %v972
    %1405 = vmatprep.subr.mxu0 0.0
    %1406 = vmatpush2.msra.mxu0 0.0
    %1407 = vmatprep.subr.mxu0 0.0
    %1408 = vmatpush2.msra.mxu0 0.0
    %1409 = vmatprep.subr.mxu0 0.0
    %1410 = vmatpush2.msra.mxu0 0.0
    %1411 = vmatprep.subr.mxu0 0.0
    %1412 = vmatpush2.msra.mxu0 0.0
    %1413 = vmatprep.subr.mxu0 0.0
    %1414 = vmatpush2.msra.mxu0 0.0
    %1415 = vmatprep.subr.mxu0 0.0
    %1416 = vmatpush2.msra.mxu0 0.0
    %1417 = vmatprep.subr.mxu0 0.0
    %1418 = vmatpush2.msra.mxu0 0.0
    %1419 = vmatprep.subr.mxu0 0.0
    %1420 = vmatpush2.msra.mxu0 0.0
    %1421 = vmatprep.subr.mxu0 0.0
    %1422 = vmatpush2.msra.mxu0 0.0
    %1423 = vmatprep.subr.mxu0 0.0
    %1424 = vmatpush2.msra.mxu0 0.0
    %1425 = vmatprep.subr.mxu0 0.0
    %1426 = vmatpush2.msra.mxu0 0.0
    %1427 = vmatprep.subr.mxu0 0.0
    %1428 = vmatpush2.msra.mxu0 0.0
    %1429 = vmatprep.subr.mxu0 0.0
    %1430 = vmatpush2.msra.mxu0 0.0
    %1431 = vmatprep.subr.mxu0 0.0
    %1432 = vmatpush2.msra.mxu0 0.0
    %1433 = vmatprep.subr.mxu0 0.0
    %1434 = vmatpush2.msra.mxu0 0.0
    %1435 = vmatprep.subr.mxu0 0.0
    %1436 = vmatpush2.msra.mxu0 0.0
    %1437 = vmatprep.mubr.f32.mxu0 0.0
    %1438 = vmatmul.mubr.f32.gmra.mxu0 %v1371
    %v1439 = vpop.f32.mrf.mxu0
    %v1440 = vadd.f32 0.0, %v1439
    %v1441 = vpop.f32.mrf.mxu0
    %1442 = vdwg.mxu0
    %v1443 = vadd.f32 %v1367, %v1440
    %v1444 = vxor.u32 %v1443, 2147483648
    %v1445 = vmul.f32 %v1444, 1.442695
    %v1446 = vpow.pop %v1445
    %v1447 = vadd.f32 %v1446, 1.0
    %v1448 = vrcp.pop %v1447
    %v1449 = vmul.f32 1.0, %v1448
    %v1450 = vmul.f32 %v1449, 2.0
    %v1451 = vsub.f32 %v1450, 1.0
    %v1452 = vmul.f32 %v1449, %v1360
    %1454 = vrot.lane.b32.xlu0 %v1451, 64
    %v1455 = vpop.permute.xlu0 %1454
    %v1457 = vmul.f32 %v1449, %v1455
    %1459 = vrot.lane.b32.xlu0 %v1457, 32
    %v1460 = vpop.permute.xlu0 %1459
    %v1462 = vadd.f32 %v1452, %v1460
    %v1463 = vtanh.pop %v1462
    %1465 = vrot.lane.b32.xlu0 %v1463, 64
    %v1466 = vpop.permute.xlu0 %1465
    %v1468 = vmul.f32 %v1449, %v1466
    %v1469 = vld [vmem:[#allocation2 + $0x8] sm:$0x3]
    %1471 = vrot.lane.b32.xlu0 %v1468, 32
    %v1472 = vpop.permute.xlu0 %1471
    %v1473 = vsel %vm132, %v1472, 0
    %1475 = vmatprep.subr.mxu0 0.0
    %1476 = vmatpush1.msra.mxu0 0.0
    %1477 = vmatprep.subr.mxu0 0.0
    %1478 = vmatpush1.msra.mxu0 0.0
    %1479 = vmatprep.subr.mxu0 0.0
    %1480 = vmatpush1.msra.mxu0 0.0
    %1481 = vmatprep.subr.mxu0 0.0
    %1482 = vmatpush1.msra.mxu0 0.0
    %1483 = vmatprep.subr.mxu0 0.0
    %1484 = vmatpush1.msra.mxu0 0.0
    %1485 = vmatprep.subr.mxu0 0.0
    %1486 = vmatpush1.msra.mxu0 0.0
    %1487 = vmatprep.subr.mxu0 0.0
    %1488 = vmatpush1.msra.mxu0 0.0
    %1489 = vmatprep.subr.mxu0 0.0
    %1490 = vmatpush1.msra.mxu0 0.0
    %1491 = vmatprep.subr.mxu0 0.0
    %1492 = vmatpush1.msra.mxu0 0.0
    %1493 = vmatprep.subr.mxu0 0.0
    %1494 = vmatpush1.msra.mxu0 0.0
    %1495 = vmatprep.subr.mxu0 0.0
    %1496 = vmatpush1.msra.mxu0 0.0
    %1497 = vmatprep.subr.mxu0 0.0
    %1498 = vmatpush1.msra.mxu0 0.0
    %1499 = vmatprep.subr.mxu0 0.0
    %1500 = vmatpush1.msra.mxu0 %v975
    %1501 = vmatprep.subr.mxu0 0.0
    %1502 = vmatpush1.msra.mxu0 %v974
    %1503 = vmatprep.subr.mxu0 0.0
    %1504 = vmatpush1.msra.mxu0 %v973
    %1505 = vmatprep.subr.mxu0 0.0
    %1506 = vmatpush1.msra.mxu0 %v972
    %1507 = vmatprep.subr.mxu0 0.0
    %1508 = vmatpush2.msra.mxu0 0.0
    %1509 = vmatprep.subr.mxu0 0.0
    %1510 = vmatpush2.msra.mxu0 0.0
    %1511 = vmatprep.subr.mxu0 0.0
    %1512 = vmatpush2.msra.mxu0 0.0
    %1513 = vmatprep.subr.mxu0 0.0
    %1514 = vmatpush2.msra.mxu0 0.0
    %1515 = vmatprep.subr.mxu0 0.0
    %1516 = vmatpush2.msra.mxu0 0.0
    %1517 = vmatprep.subr.mxu0 0.0
    %1518 = vmatpush2.msra.mxu0 0.0
    %1519 = vmatprep.subr.mxu0 0.0
    %1520 = vmatpush2.msra.mxu0 0.0
    %1521 = vmatprep.subr.mxu0 0.0
    %1522 = vmatpush2.msra.mxu0 0.0
    %1523 = vmatprep.subr.mxu0 0.0
    %1524 = vmatpush2.msra.mxu0 0.0
    %1525 = vmatprep.subr.mxu0 0.0
    %1526 = vmatpush2.msra.mxu0 0.0
    %1527 = vmatprep.subr.mxu0 0.0
    %1528 = vmatpush2.msra.mxu0 0.0
    %1529 = vmatprep.subr.mxu0 0.0
    %1530 = vmatpush2.msra.mxu0 0.0
    %1531 = vmatprep.subr.mxu0 0.0
    %1532 = vmatpush2.msra.mxu0 0.0
    %1533 = vmatprep.subr.mxu0 0.0
    %1534 = vmatpush2.msra.mxu0 0.0
    %1535 = vmatprep.subr.mxu0 0.0
    %1536 = vmatpush2.msra.mxu0 0.0
    %1537 = vmatprep.subr.mxu0 0.0
    %1538 = vmatpush2.msra.mxu0 0.0
    %1539 = vmatprep.mubr.f32.mxu0 0.0
    %1540 = vmatmul.mubr.f32.gmra.mxu0 %v1473
    %v1541 = vpop.f32.mrf.mxu0
    %v1542 = vadd.f32 0.0, %v1541
    %v1543 = vpop.f32.mrf.mxu0
    %1544 = vdwg.mxu0
    %v1545 = vadd.f32 %v1469, %v1542
    %v1546 = vxor.u32 %v1545, 2147483648
    %v1547 = vmul.f32 %v1546, 1.442695
    %v1548 = vpow.pop %v1547
    %v1549 = vadd.f32 %v1548, 1.0
    %v1550 = vrcp.pop %v1549
    %v1551 = vmul.f32 1.0, %v1550
    %v1552 = vmul.f32 %v1551, 2.0
    %v1553 = vsub.f32 %v1552, 1.0
    %v1554 = vmul.f32 %v1551, %v1462
    %1556 = vrot.lane.b32.xlu0 %v1553, 64
    %v1557 = vpop.permute.xlu0 %1556
    %v1559 = vmul.f32 %v1551, %v1557
    %1561 = vrot.lane.b32.xlu0 %v1559, 32
    %v1562 = vpop.permute.xlu0 %1561
    %v1564 = vadd.f32 %v1554, %v1562
    %v1565 = vtanh.pop %v1564
    %1567 = vrot.lane.b32.xlu0 %v1565, 64
    %v1568 = vpop.permute.xlu0 %1567
    %v1570 = vmul.f32 %v1551, %v1568
    %v1571 = vld [vmem:[#allocation2 + $0xa] sm:$0x3]
    %1573 = vrot.lane.b32.xlu0 %v1570, 32
    %v1574 = vpop.permute.xlu0 %1573
    %v1575 = vsel %vm132, %v1574, 0
    %1577 = vmatprep.subr.mxu0 0.0
    %1578 = vmatpush1.msra.mxu0 0.0
    %1579 = vmatprep.subr.mxu0 0.0
    %1580 = vmatpush1.msra.mxu0 0.0
    %1581 = vmatprep.subr.mxu0 0.0
    %1582 = vmatpush1.msra.mxu0 0.0
    %1583 = vmatprep.subr.mxu0 0.0
    %1584 = vmatpush1.msra.mxu0 0.0
    %1585 = vmatprep.subr.mxu0 0.0
    %1586 = vmatpush1.msra.mxu0 0.0
    %1587 = vmatprep.subr.mxu0 0.0
    %1588 = vmatpush1.msra.mxu0 0.0
    %1589 = vmatprep.subr.mxu0 0.0
    %1590 = vmatpush1.msra.mxu0 0.0
    %1591 = vmatprep.subr.mxu0 0.0
    %1592 = vmatpush1.msra.mxu0 0.0
    %1593 = vmatprep.subr.mxu0 0.0
    %1594 = vmatpush1.msra.mxu0 0.0
    %1595 = vmatprep.subr.mxu0 0.0
    %1596 = vmatpush1.msra.mxu0 0.0
    %1597 = vmatprep.subr.mxu0 0.0
    %1598 = vmatpush1.msra.mxu0 0.0
    %1599 = vmatprep.subr.mxu0 0.0
    %1600 = vmatpush1.msra.mxu0 0.0
    %1601 = vmatprep.subr.mxu0 0.0
    %1602 = vmatpush1.msra.mxu0 %v975
    %1603 = vmatprep.subr.mxu0 0.0
    %1604 = vmatpush1.msra.mxu0 %v974
    %1605 = vmatprep.subr.mxu0 0.0
    %1606 = vmatpush1.msra.mxu0 %v973
    %1607 = vmatprep.subr.mxu0 0.0
    %1608 = vmatpush1.msra.mxu0 %v972
    %1609 = vmatprep.subr.mxu0 0.0
    %1610 = vmatpush2.msra.mxu0 0.0
    %1611 = vmatprep.subr.mxu0 0.0
    %1612 = vmatpush2.msra.mxu0 0.0
    %1613 = vmatprep.subr.mxu0 0.0
    %1614 = vmatpush2.msra.mxu0 0.0
    %1615 = vmatprep.subr.mxu0 0.0
    %1616 = vmatpush2.msra.mxu0 0.0
    %1617 = vmatprep.subr.mxu0 0.0
    %1618 = vmatpush2.msra.mxu0 0.0
    %1619 = vmatprep.subr.mxu0 0.0
    %1620 = vmatpush2.msra.mxu0 0.0
    %1621 = vmatprep.subr.mxu0 0.0
    %1622 = vmatpush2.msra.mxu0 0.0
    %1623 = vmatprep.subr.mxu0 0.0
    %1624 = vmatpush2.msra.mxu0 0.0
    %1625 = vmatprep.subr.mxu0 0.0
    %1626 = vmatpush2.msra.mxu0 0.0
    %1627 = vmatprep.subr.mxu0 0.0
    %1628 = vmatpush2.msra.mxu0 0.0
    %1629 = vmatprep.subr.mxu0 0.0
    %1630 = vmatpush2.msra.mxu0 0.0
    %1631 = vmatprep.subr.mxu0 0.0
    %1632 = vmatpush2.msra.mxu0 0.0
    %1633 = vmatprep.subr.mxu0 0.0
    %1634 = vmatpush2.msra.mxu0 0.0
    %1635 = vmatprep.subr.mxu0 0.0
    %1636 = vmatpush2.msra.mxu0 0.0
    %1637 = vmatprep.subr.mxu0 0.0
    %1638 = vmatpush2.msra.mxu0 0.0
    %1639 = vmatprep.subr.mxu0 0.0
    %1640 = vmatpush2.msra.mxu0 0.0
    %1641 = vmatprep.mubr.f32.mxu0 0.0
    %1642 = vmatmul.mubr.f32.gmra.mxu0 %v1575
    %v1643 = vpop.f32.mrf.mxu0
    %v1644 = vadd.f32 0.0, %v1643
    %v1645 = vpop.f32.mrf.mxu0
    %1646 = vdwg.mxu0
    %v1647 = vadd.f32 %v1571, %v1644
    %v1648 = vxor.u32 %v1647, 2147483648
    %v1649 = vmul.f32 %v1648, 1.442695
    %v1650 = vpow.pop %v1649
    %v1651 = vadd.f32 %v1650, 1.0
    %v1652 = vrcp.pop %v1651
    %v1653 = vmul.f32 1.0, %v1652
    %v1654 = vmul.f32 %v1653, 2.0
    %v1655 = vsub.f32 %v1654, 1.0
    %v1656 = vmul.f32 %v1653, %v1564
    %1658 = vrot.lane.b32.xlu0 %v1655, 64
    %v1659 = vpop.permute.xlu0 %1658
    %v1661 = vmul.f32 %v1653, %v1659
    %1663 = vrot.lane.b32.xlu0 %v1661, 32
    %v1664 = vpop.permute.xlu0 %1663
    %v1666 = vadd.f32 %v1656, %v1664
    %v1667 = vtanh.pop %v1666
    %1669 = vrot.lane.b32.xlu0 %v1667, 64
    %v1670 = vpop.permute.xlu0 %1669
    %v1672 = vmul.f32 %v1653, %v1670
    %v1673 = vld [vmem:[#allocation2 + $0xc] sm:$0x3]
    %1675 = vrot.lane.b32.xlu0 %v1672, 32
    %v1676 = vpop.permute.xlu0 %1675
    %v1677 = vsel %vm132, %v1676, 0
    %1679 = vmatprep.subr.mxu0 0.0
    %1680 = vmatpush1.msra.mxu0 0.0
    %1681 = vmatprep.subr.mxu0 0.0
    %1682 = vmatpush1.msra.mxu0 0.0
    %1683 = vmatprep.subr.mxu0 0.0
    %1684 = vmatpush1.msra.mxu0 0.0
    %1685 = vmatprep.subr.mxu0 0.0
    %1686 = vmatpush1.msra.mxu0 0.0
    %1687 = vmatprep.subr.mxu0 0.0
    %1688 = vmatpush1.msra.mxu0 0.0
    %1689 = vmatprep.subr.mxu0 0.0
    %1690 = vmatpush1.msra.mxu0 0.0
    %1691 = vmatprep.subr.mxu0 0.0
    %1692 = vmatpush1.msra.mxu0 0.0
    %1693 = vmatprep.subr.mxu0 0.0
    %1694 = vmatpush1.msra.mxu0 0.0
    %1695 = vmatprep.subr.mxu0 0.0
    %1696 = vmatpush1.msra.mxu0 0.0
    %1697 = vmatprep.subr.mxu0 0.0
    %1698 = vmatpush1.msra.mxu0 0.0
    %1699 = vmatprep.subr.mxu0 0.0
    %1700 = vmatpush1.msra.mxu0 0.0
    %1701 = vmatprep.subr.mxu0 0.0
    %1702 = vmatpush1.msra.mxu0 0.0
    %1703 = vmatprep.subr.mxu0 0.0
    %1704 = vmatpush1.msra.mxu0 %v975
    %1705 = vmatprep.subr.mxu0 0.0
    %1706 = vmatpush1.msra.mxu0 %v974
    %1707 = vmatprep.subr.mxu0 0.0
    %1708 = vmatpush1.msra.mxu0 %v973
    %1709 = vmatprep.subr.mxu0 0.0
    %1710 = vmatpush1.msra.mxu0 %v972
    %1711 = vmatprep.subr.mxu0 0.0
    %1712 = vmatpush2.msra.mxu0 0.0
    %1713 = vmatprep.subr.mxu0 0.0
    %1714 = vmatpush2.msra.mxu0 0.0
    %1715 = vmatprep.subr.mxu0 0.0
    %1716 = vmatpush2.msra.mxu0 0.0
    %1717 = vmatprep.subr.mxu0 0.0
    %1718 = vmatpush2.msra.mxu0 0.0
    %1719 = vmatprep.subr.mxu0 0.0
    %1720 = vmatpush2.msra.mxu0 0.0
    %1721 = vmatprep.subr.mxu0 0.0
    %1722 = vmatpush2.msra.mxu0 0.0
    %1723 = vmatprep.subr.mxu0 0.0
    %1724 = vmatpush2.msra.mxu0 0.0
    %1725 = vmatprep.subr.mxu0 0.0
    %1726 = vmatpush2.msra.mxu0 0.0
    %1727 = vmatprep.subr.mxu0 0.0
    %1728 = vmatpush2.msra.mxu0 0.0
    %1729 = vmatprep.subr.mxu0 0.0
    %1730 = vmatpush2.msra.mxu0 0.0
    %1731 = vmatprep.subr.mxu0 0.0
    %1732 = vmatpush2.msra.mxu0 0.0
    %1733 = vmatprep.subr.mxu0 0.0
    %1734 = vmatpush2.msra.mxu0 0.0
    %1735 = vmatprep.subr.mxu0 0.0
    %1736 = vmatpush2.msra.mxu0 0.0
    %1737 = vmatprep.subr.mxu0 0.0
    %1738 = vmatpush2.msra.mxu0 0.0
    %1739 = vmatprep.subr.mxu0 0.0
    %1740 = vmatpush2.msra.mxu0 0.0
    %1741 = vmatprep.subr.mxu0 0.0
    %1742 = vmatpush2.msra.mxu0 0.0
    %1743 = vmatprep.mubr.f32.mxu0 0.0
    %1744 = vmatmul.mubr.f32.gmra.mxu0 %v1677
    %v1745 = vpop.f32.mrf.mxu0
    %v1746 = vadd.f32 0.0, %v1745
    %v1747 = vpop.f32.mrf.mxu0
    %1748 = vdwg.mxu0
    %v1749 = vadd.f32 %v1673, %v1746
    %v1750 = vxor.u32 %v1749, 2147483648
    %v1751 = vmul.f32 %v1750, 1.442695
    %v1752 = vpow.pop %v1751
    %v1753 = vadd.f32 %v1752, 1.0
    %v1754 = vrcp.pop %v1753
    %v1755 = vmul.f32 1.0, %v1754
    %v1756 = vmul.f32 %v1755, 2.0
    %v1757 = vsub.f32 %v1756, 1.0
    %v1758 = vmul.f32 %v1755, %v1666
    %1760 = vrot.lane.b32.xlu0 %v1757, 64
    %v1761 = vpop.permute.xlu0 %1760
    %v1763 = vmul.f32 %v1755, %v1761
    %1765 = vrot.lane.b32.xlu0 %v1763, 32
    %v1766 = vpop.permute.xlu0 %1765
    %v1768 = vadd.f32 %v1758, %v1766
    %v1769 = vtanh.pop %v1768
    %1771 = vrot.lane.b32.xlu0 %v1769, 64
    %v1772 = vpop.permute.xlu0 %1771
    %v1774 = vmul.f32 %v1755, %v1772
    %v1775 = vld [vmem:[#allocation2 + $0xe] sm:$0x3]
    %1777 = vrot.lane.b32.xlu0 %v1774, 32
    %v1778 = vpop.permute.xlu0 %1777
    %v1779 = vsel %vm132, %v1778, 0
    %1781 = vmatprep.subr.mxu0 0.0
    %1782 = vmatpush1.msra.mxu0 0.0
    %1783 = vmatprep.subr.mxu0 0.0
    %1784 = vmatpush1.msra.mxu0 0.0
    %1785 = vmatprep.subr.mxu0 0.0
    %1786 = vmatpush1.msra.mxu0 0.0
    %1787 = vmatprep.subr.mxu0 0.0
    %1788 = vmatpush1.msra.mxu0 0.0
    %1789 = vmatprep.subr.mxu0 0.0
    %1790 = vmatpush1.msra.mxu0 0.0
    %1791 = vmatprep.subr.mxu0 0.0
    %1792 = vmatpush1.msra.mxu0 0.0
    %1793 = vmatprep.subr.mxu0 0.0
    %1794 = vmatpush1.msra.mxu0 0.0
    %1795 = vmatprep.subr.mxu0 0.0
    %1796 = vmatpush1.msra.mxu0 0.0
    %1797 = vmatprep.subr.mxu0 0.0
    %1798 = vmatpush1.msra.mxu0 0.0
    %1799 = vmatprep.subr.mxu0 0.0
    %1800 = vmatpush1.msra.mxu0 0.0
    %1801 = vmatprep.subr.mxu0 0.0
    %1802 = vmatpush1.msra.mxu0 0.0
    %1803 = vmatprep.subr.mxu0 0.0
    %1804 = vmatpush1.msra.mxu0 0.0
    %1805 = vmatprep.subr.mxu0 0.0
    %1806 = vmatpush1.msra.mxu0 %v975
    %1807 = vmatprep.subr.mxu0 0.0
    %1808 = vmatpush1.msra.mxu0 %v974
    %1809 = vmatprep.subr.mxu0 0.0
    %1810 = vmatpush1.msra.mxu0 %v973
    %1811 = vmatprep.subr.mxu0 0.0
    %1812 = vmatpush1.msra.mxu0 %v972
    %1813 = vmatprep.subr.mxu0 0.0
    %1814 = vmatpush2.msra.mxu0 0.0
    %1815 = vmatprep.subr.mxu0 0.0
    %1816 = vmatpush2.msra.mxu0 0.0
    %1817 = vmatprep.subr.mxu0 0.0
    %1818 = vmatpush2.msra.mxu0 0.0
    %1819 = vmatprep.subr.mxu0 0.0
    %1820 = vmatpush2.msra.mxu0 0.0
    %1821 = vmatprep.subr.mxu0 0.0
    %1822 = vmatpush2.msra.mxu0 0.0
    %1823 = vmatprep.subr.mxu0 0.0
    %1824 = vmatpush2.msra.mxu0 0.0
    %1825 = vmatprep.subr.mxu0 0.0
    %1826 = vmatpush2.msra.mxu0 0.0
    %1827 = vmatprep.subr.mxu0 0.0
    %1828 = vmatpush2.msra.mxu0 0.0
    %1829 = vmatprep.subr.mxu0 0.0
    %1830 = vmatpush2.msra.mxu0 0.0
    %1831 = vmatprep.subr.mxu0 0.0
    %1832 = vmatpush2.msra.mxu0 0.0
    %1833 = vmatprep.subr.mxu0 0.0
    %1834 = vmatpush2.msra.mxu0 0.0
    %1835 = vmatprep.subr.mxu0 0.0
    %1836 = vmatpush2.msra.mxu0 0.0
    %1837 = vmatprep.subr.mxu0 0.0
    %1838 = vmatpush2.msra.mxu0 0.0
    %1839 = vmatprep.subr.mxu0 0.0
    %1840 = vmatpush2.msra.mxu0 0.0
    %1841 = vmatprep.subr.mxu0 0.0
    %1842 = vmatpush2.msra.mxu0 0.0
    %1843 = vmatprep.subr.mxu0 0.0
    %1844 = vmatpush2.msra.mxu0 0.0
    %1845 = vmatprep.mubr.f32.mxu0 0.0
    %1846 = vmatmul.mubr.f32.gmra.mxu0 %v1779
    %v1847 = vpop.f32.mrf.mxu0
    %v1848 = vadd.f32 0.0, %v1847
    %v1849 = vpop.f32.mrf.mxu0
    %1850 = vdwg.mxu0
    %v1851 = vadd.f32 %v1775, %v1848
    %v1852 = vxor.u32 %v1851, 2147483648
    %v1853 = vmul.f32 %v1852, 1.442695
    %v1854 = vpow.pop %v1853
    %v1855 = vadd.f32 %v1854, 1.0
    %v1856 = vrcp.pop %v1855
    %v1857 = vmul.f32 1.0, %v1856
    %v1858 = vmul.f32 %v1857, 2.0
    %v1859 = vsub.f32 %v1858, 1.0
    %v1860 = vmul.f32 %v1857, %v1768
    %1862 = vrot.lane.b32.xlu0 %v1859, 64
    %v1863 = vpop.permute.xlu0 %1862
    %v1865 = vmul.f32 %v1857, %v1863
    %1867 = vrot.lane.b32.xlu0 %v1865, 32
    %v1868 = vpop.permute.xlu0 %1867
    %v1870 = vadd.f32 %v1860, %v1868
    %v1871 = vtanh.pop %v1870
    %1873 = vrot.lane.b32.xlu0 %v1871, 64
    %v1874 = vpop.permute.xlu0 %1873
    %v1876 = vmul.f32 %v1857, %v1874
    %v1877 = vld [vmem:[%s7] sm:$0xff]
    %v1878 = vld [vmem:[%s7 + $0x8] sm:$0xff]
    %v1879 = vld [vmem:[%s7 + $0x10] sm:$0xff]
    %v1880 = vld [vmem:[%s7 + $0x18] sm:$0xff]
    %v1881 = vld [vmem:[%s8] sm:$0x1]
    %v1883 = vlaneseq
    %v1884 = vshrl.u32 %v1883, 7
    %v1885 = vsub.s32 0, %v1884
    %v1886 = vrot.slane %v1881, %v1885
    %1889 = vrot.lane.b32.xlu0 %v1876, 32
    %v1890 = vpop.permute.xlu0 %1889
    %v1891 = vsel %vm132, %v1890, 0
    %1893 = vmatprep.subr.mxu0 0.0
    %1894 = vmatpush1.msra.mxu0 0.0
    %1895 = vmatprep.subr.mxu0 0.0
    %1896 = vmatpush1.msra.mxu0 0.0
    %1897 = vmatprep.subr.mxu0 0.0
    %1898 = vmatpush1.msra.mxu0 0.0
    %1899 = vmatprep.subr.mxu0 0.0
    %1900 = vmatpush1.msra.mxu0 0.0
    %1901 = vmatprep.subr.mxu0 0.0
    %1902 = vmatpush1.msra.mxu0 0.0
    %1903 = vmatprep.subr.mxu0 0.0
    %1904 = vmatpush1.msra.mxu0 0.0
    %1905 = vmatprep.subr.mxu0 0.0
    %1906 = vmatpush1.msra.mxu0 0.0
    %1907 = vmatprep.subr.mxu0 0.0
    %1908 = vmatpush1.msra.mxu0 0.0
    %1909 = vmatprep.subr.mxu0 0.0
    %1910 = vmatpush1.msra.mxu0 0.0
    %1911 = vmatprep.subr.mxu0 0.0
    %1912 = vmatpush1.msra.mxu0 0.0
    %1913 = vmatprep.subr.mxu0 0.0
    %1914 = vmatpush1.msra.mxu0 0.0
    %1915 = vmatprep.subr.mxu0 0.0
    %1916 = vmatpush1.msra.mxu0 0.0
    %1917 = vmatprep.subr.mxu0 0.0
    %1918 = vmatpush1.msra.mxu0 %v1880
    %1919 = vmatprep.subr.mxu0 0.0
    %1920 = vmatpush1.msra.mxu0 %v1879
    %1921 = vmatprep.subr.mxu0 0.0
    %1922 = vmatpush1.msra.mxu0 %v1878
    %1923 = vmatprep.subr.mxu0 0.0
    %1924 = vmatpush1.msra.mxu0 %v1877
    %1925 = vmatprep.subr.mxu0 0.0
    %1926 = vmatpush2.msra.mxu0 0.0
    %1927 = vmatprep.subr.mxu0 0.0
    %1928 = vmatpush2.msra.mxu0 0.0
    %1929 = vmatprep.subr.mxu0 0.0
    %1930 = vmatpush2.msra.mxu0 0.0
    %1931 = vmatprep.subr.mxu0 0.0
    %1932 = vmatpush2.msra.mxu0 0.0
    %1933 = vmatprep.subr.mxu0 0.0
    %1934 = vmatpush2.msra.mxu0 0.0
    %1935 = vmatprep.subr.mxu0 0.0
    %1936 = vmatpush2.msra.mxu0 0.0
    %1937 = vmatprep.subr.mxu0 0.0
    %1938 = vmatpush2.msra.mxu0 0.0
    %1939 = vmatprep.subr.mxu0 0.0
    %1940 = vmatpush2.msra.mxu0 0.0
    %1941 = vmatprep.subr.mxu0 0.0
    %1942 = vmatpush2.msra.mxu0 0.0
    %1943 = vmatprep.subr.mxu0 0.0
    %1944 = vmatpush2.msra.mxu0 0.0
    %1945 = vmatprep.subr.mxu0 0.0
    %1946 = vmatpush2.msra.mxu0 0.0
    %1947 = vmatprep.subr.mxu0 0.0
    %1948 = vmatpush2.msra.mxu0 0.0
    %1949 = vmatprep.subr.mxu0 0.0
    %1950 = vmatpush2.msra.mxu0 0.0
    %1951 = vmatprep.subr.mxu0 0.0
    %1952 = vmatpush2.msra.mxu0 0.0
    %1953 = vmatprep.subr.mxu0 0.0
    %1954 = vmatpush2.msra.mxu0 0.0
    %1955 = vmatprep.subr.mxu0 0.0
    %1956 = vmatpush2.msra.mxu0 0.0
    %1957 = vmatprep.mubr.f32.mxu0 0.0
    %1958 = vmatmul.mubr.f32.gmra.mxu0 %v1891
    %v1959 = vpop.f32.mrf.mxu0
    %v1960 = vadd.f32 %v1886, %v1959
    %v1961 = vpop.f32.mrf.mxu0
    %1962 = vdwg.mxu0
    %vm1963 = vcmask 25600
    %1964 = vst.msk [vmem:[#allocation4] sm:$0x3] %vm1963, %v1960
    // Predicated region
    $region38: #{lstm_model_forward.1} parent=1 // pred_check
      _
    $region39: #{lstm_model_forward.1} parent=1 // pred_check_branch
      %1966 = sbr.rel (0) target = $region41
    $region40: #{lstm_model_forward.1} parent=1 // pred_region
      %s1968 = ssub.s32 32, 32
      %1969 = vsyncadd [#allocation5], %s1968
      %s1971 = sshll.u32 [#allocation4], 4
      %s1972 = int_to_ptr.vmem [resolvable:$true] %s1971
      %1974 = dma.vmem_to_hbm [thread:$0]  %s1972, 32, %s9, [#allocation5]
    $region41: #{lstm_model_forward.1} parent=1 // pred_fallthru
      _
    // Predicated region
    $region42: #{lstm_model_forward.1} parent=1 // pred_check
      _
    $region43: #{lstm_model_forward.1} parent=1 // pred_check_branch
      %1976 = sbr.rel (0) target = $region45
    $region44: #{lstm_model_forward.1} parent=1 // pred_region
      %1977 = dma.done [#allocation5], 32
    $region45: #{lstm_model_forward.1} parent=1 // pred_fallthru
      _
    %1978 = vsyncpa [#allocation5], 1

</llo_original>
